<compile_context>
chip_gen: v5e
topology: v5e:2x2
jax: 0.10.0
libtpu: 0.0.40
codegen_flags: <defaults>
</compile_context>

<pallas_src>
import jax
import jax.numpy as jnp
from jax.experimental import pallas as pl
from jax.experimental.pallas import tpu as pltpu

IN_DIM = 25
H1_DIM = 64
H2_DIM = 32
OUT_DIM = 1


def mlp_kernel(x_ref, w1_ref, b1_ref, w2_ref, b2_ref, w3t_ref, b3_ref, o_ref):
    # x_ref: (TB, 25) f32    w1: (25, 64) bf16   w2: (64, 32) bf16
    # w3t:  (1, 32)  f32     b1: (1, 64) f32     b2: (1, 32) f32   b3: (1, 1) f32
    # o_ref: (TB, 1) f32
    x = x_ref[...].astype(w1_ref.dtype)          # in-kernel bf16 cast (VPU, free-ish)

    # fc1 + ReLU (MXU matmul, f32 accumulation; epilogue stays in f32).
    h1 = jnp.dot(x, w1_ref[...], preferred_element_type=jnp.float32) + b1_ref[...]
    h1 = jnp.maximum(h1, 0.0)

    # fc2 + ReLU
    h2 = jnp.dot(h1.astype(w2_ref.dtype), w2_ref[...],
                 preferred_element_type=jnp.float32) + b2_ref[...]
    h2 = jnp.maximum(h2, 0.0)

    # fc3 (+ sigmoid) on the VPU/XLU: broadcast w3 over lanes, lane-reduce.
    # Avoids burning vex-slot (MXU) pushes / a per-step relayout for a 32-MAC layer.
    logits = jnp.sum(h2 * w3t_ref[...], axis=-1, keepdims=True) + b3_ref[...]
    o_ref[...] = jax.nn.sigmoid(logits).astype(o_ref.dtype)


def _round_up_128(n):
    return ((int(n) + 127) // 128) * 128


def mlp_forward(x, params, *, tile_b=4096, matmul_dtype=jnp.bfloat16):
    """x: (B, 25) float32 -> (B, 1) float32 (sigmoid probabilities)."""
    w1, b1, w2, b2, w3, b3 = params
    B = x.shape[0]

    tile_b = max(128, int(tile_b))
    assert tile_b % 128 == 0, "tile_b must be a multiple of 128 (lane width)"

    # Ensure >= 2 grid steps when the batch allows it, so both TensorCores on
    # v7x get work via the "parallel" grid axis (harmless on v5e/v6e).
    if B > 128:
        tile_b = min(tile_b, _round_up_128(pl.cdiv(B, 2)))

    num_tiles = pl.cdiv(B, tile_b)
    b_pad = num_tiles * tile_b
    if b_pad != B:
        # Zero-pad the ragged last tile; padded rows are sliced off below.
        x = jnp.pad(x, ((0, b_pad - B), (0, 0)))

    # x stays f32 (cast to bf16 inside the kernel).  Small resident weights for
    # fc1/fc2 are cast once here; fc3 weight stays f32 (VPU path).
    w1c = w1.astype(matmul_dtype)
    w2c = w2.astype(matmul_dtype)
    w3t = jnp.transpose(w3).astype(jnp.float32)        # (1, 32)
    b1f = b1.astype(jnp.float32)
    b2f = b2.astype(jnp.float32)
    b3f = b3.astype(jnp.float32)

    full = lambda shape: pl.BlockSpec(shape, lambda i: (0, 0))

    w_itemsize = jnp.dtype(matmul_dtype).itemsize
    mxu_param_elems = IN_DIM * H1_DIM + H1_DIM * H2_DIM
    param_elems = mxu_param_elems + H2_DIM * OUT_DIM
    cost = pl.CostEstimate(
        flops=2 * b_pad * param_elems,
        transcendentals=b_pad,                                   # sigmoid
        bytes_accessed=(b_pad * IN_DIM * 4                       # x stream (f32)
                        + b_pad * OUT_DIM * 4                    # output (f32)
                        + mxu_param_elems * w_itemsize           # w1, w2 (bf16)
                        + H2_DIM * OUT_DIM * 4                   # w3 (f32)
                        + (H1_DIM + H2_DIM + OUT_DIM) * 4),      # biases
    )

    out = pl.pallas_call(
        mlp_kernel,
        out_shape=jax.ShapeDtypeStruct((b_pad, OUT_DIM), jnp.float32),
        grid_spec=pltpu.PrefetchScalarGridSpec(
            num_scalar_prefetch=0,
            grid=(num_tiles,),
            in_specs=[
                pl.BlockSpec((tile_b, IN_DIM), lambda i: (i, 0)),   # x tile (f32)
                full((IN_DIM, H1_DIM)),                             # w1 (bf16)
                full((1, H1_DIM)),                                  # b1
                full((H1_DIM, H2_DIM)),                             # w2 (bf16)
                full((1, H2_DIM)),                                  # b2
                full((OUT_DIM, H2_DIM)),                            # w3^T (f32)
                full((1, OUT_DIM)),                                 # b3
            ],
            out_specs=pl.BlockSpec((tile_b, OUT_DIM), lambda i: (i, 0)),
        ),
        compiler_params=pltpu.CompilerParams(
            dimension_semantics=("parallel",),
        ),
        cost_estimate=cost,
    )(x, w1c, b1f, w2c, b2f, w3t, b3f)

    return out[:B]                                    # (B, 1) f32


def init_params(key):
    """Deterministic init mimicking PyTorch nn.Linear (uniform +/- 1/sqrt(fan_in))."""
    def linear(k, fan_in, fan_out):
        kw, kb = jax.random.split(k)
        bound = 1.0 / jnp.sqrt(fan_in)
        # stored as (in, out) so the math is x @ W (== PyTorch x @ W.T + b)
        w = jax.random.uniform(kw, (fan_in, fan_out), jnp.float32, -bound, bound)
        b = jax.random.uniform(kb, (1, fan_out), jnp.float32, -bound, bound)
        return w, b

    k1, k2, k3 = jax.random.split(key, 3)
    w1, b1 = linear(k1, IN_DIM, H1_DIM)
    w2, b2 = linear(k2, H1_DIM, H2_DIM)
    w3, b3 = linear(k3, H2_DIM, OUT_DIM)
    return (w1, b1, w2, b2, w3, b3)


def mlp_reference(x, params, matmul_dtype=jnp.float32):
    """Pure-JAX reference; optionally mimics the kernel's bf16 fc1/fc2 recipe
    (fc3 is always f32, matching the kernel's VPU path)."""
    w1, b1, w2, b2, w3, b3 = params
    h1 = jnp.dot(x.astype(matmul_dtype), w1.astype(matmul_dtype),
                 preferred_element_type=jnp.float32) + b1
    h1 = jnp.maximum(h1, 0.0)
    h2 = jnp.dot(h1.astype(matmul_dtype), w2.astype(matmul_dtype),
                 preferred_element_type=jnp.float32) + b2
    h2 = jnp.maximum(h2, 0.0)
    logits = jnp.dot(h2, w3.astype(jnp.float32),
                     preferred_element_type=jnp.float32) + b3
    return jax.nn.sigmoid(logits)


if __name__ == "__main__":
    key = jax.random.PRNGKey(0)
    k_params, k_x = jax.random.split(key)

    params = init_params(k_params)
    batch = 777  # not a multiple of 128: exercises pad path and the >=2-tile split
    x = jax.random.normal(k_x, (batch, IN_DIM), dtype=jnp.float32)

    out = mlp_forward(x, params)
    out = jax.block_until_ready(out)
    assert out.shape == (batch, OUT_DIM)

    # Tight check vs. a reference using the same bf16-fc1/fc2 / f32-fc3 recipe.
    ref_bf16 = mlp_reference(x, params, matmul_dtype=jnp.bfloat16)
    assert jnp.allclose(out, ref_bf16, atol=1e-3, rtol=1e-3), "mismatch vs bf16 reference"

    # Loose check vs. the pure-f32 reference (bf16 operands => ~1e-2 level error).
    ref_f32 = mlp_reference(x, params, matmul_dtype=jnp.float32)
    assert jnp.allclose(out, ref_f32, atol=3e-2, rtol=3e-2), "mismatch vs f32 reference"

    print("KERNEL_OK")
</pallas_src>

<mosaic_0001>
module attributes {stable_mosaic.version = 11 : i64} {
  func.func @mlp_kernel(%arg0: i32, %arg1: memref<512x25xf32, #tpu.memory_space<vmem>>, %arg2: memref<25x64xbf16, #tpu.memory_space<vmem>>, %arg3: memref<1x64xf32, #tpu.memory_space<vmem>>, %arg4: memref<64x32xbf16, #tpu.memory_space<vmem>>, %arg5: memref<1x32xf32, #tpu.memory_space<vmem>>, %arg6: memref<1x32xf32, #tpu.memory_space<vmem>>, %arg7: memref<1x1xf32, #tpu.memory_space<vmem>>, %arg8: memref<512x1xf32, #tpu.memory_space<vmem>>) attributes {dimension_semantics = [#tpu.dimension_semantics<parallel>], iteration_bounds = array<i64: 2>, scalar_prefetch = 0 : i64, scratch_operands = 0 : i64, tpu.core_type = #tpu.core_type<tc>, window_params = [{transform_indices = @transform_0, window_bounds = array<i64: 512, 25>}, {pipeline_mode = #tpu.pipeline_mode<synchronous>, transform_indices = @transform_1, window_bounds = array<i64: 25, 64>}, {pipeline_mode = #tpu.pipeline_mode<synchronous>, transform_indices = @transform_2, window_bounds = array<i64: 1, 64>}, {pipeline_mode = #tpu.pipeline_mode<synchronous>, transform_indices = @transform_3, window_bounds = array<i64: 64, 32>}, {pipeline_mode = #tpu.pipeline_mode<synchronous>, transform_indices = @transform_4, window_bounds = array<i64: 1, 32>}, {pipeline_mode = #tpu.pipeline_mode<synchronous>, transform_indices = @transform_5, window_bounds = array<i64: 1, 32>}, {pipeline_mode = #tpu.pipeline_mode<synchronous>, transform_indices = @transform_6, window_bounds = array<i64: 1, 1>}, {transform_indices = @transform_7, window_bounds = array<i64: 512, 1>}]} {
    %c0 = arith.constant 0 : index
    %c0_0 = arith.constant 0 : index
    %0 = vector.load %arg1[%c0, %c0_0] : memref<512x25xf32, #tpu.memory_space<vmem>>, vector<512x25xf32>
    %1 = arith.truncf %0 : vector<512x25xf32> to vector<512x25xbf16>
    %c0_1 = arith.constant 0 : index
    %c0_2 = arith.constant 0 : index
    %2 = vector.load %arg2[%c0_1, %c0_2] : memref<25x64xbf16, #tpu.memory_space<vmem>>, vector<25x64xbf16>
    %cst = arith.constant dense<0.000000e+00> : vector<512x64xf32>
    %3 = tpu.matmul %1, %2, %cst {dimension_numbers = #tpu.dot_dimension_numbers<[1], [0], [0], [1], [0, 0, 1, 1], [], []>} : vector<512x25xbf16>, vector<25x64xbf16>, vector<512x64xf32> -> vector<512x64xf32>
    %c0_3 = arith.constant 0 : index
    %c0_4 = arith.constant 0 : index
    %4 = vector.load %arg3[%c0_3, %c0_4] : memref<1x64xf32, #tpu.memory_space<vmem>>, vector<1x64xf32>
    %5 = vector.broadcast %4 : vector<1x64xf32> to vector<512x64xf32>
    %6 = arith.addf %3, %5 : vector<512x64xf32>
    %cst_5 = arith.constant 0.000000e+00 : f32
    %7 = vector.broadcast %cst_5 : f32 to vector<512x64xf32>
    %8 = arith.maximumf %6, %7 : vector<512x64xf32>
    %9 = arith.truncf %8 : vector<512x64xf32> to vector<512x64xbf16>
    %c0_6 = arith.constant 0 : index
    %c0_7 = arith.constant 0 : index
    %10 = vector.load %arg4[%c0_6, %c0_7] : memref<64x32xbf16, #tpu.memory_space<vmem>>, vector<64x32xbf16>
    %cst_8 = arith.constant dense<0.000000e+00> : vector<512x32xf32>
    %11 = tpu.matmul %9, %10, %cst_8 {dimension_numbers = #tpu.dot_dimension_numbers<[1], [0], [0], [1], [0, 0, 1, 1], [], []>} : vector<512x64xbf16>, vector<64x32xbf16>, vector<512x32xf32> -> vector<512x32xf32>
    %c0_9 = arith.constant 0 : index
    %c0_10 = arith.constant 0 : index
    %12 = vector.load %arg5[%c0_9, %c0_10] : memref<1x32xf32, #tpu.memory_space<vmem>>, vector<1x32xf32>
    %13 = vector.broadcast %12 : vector<1x32xf32> to vector<512x32xf32>
    %14 = arith.addf %11, %13 : vector<512x32xf32>
    %cst_11 = arith.constant 0.000000e+00 : f32
    %15 = vector.broadcast %cst_11 : f32 to vector<512x32xf32>
    %16 = arith.maximumf %14, %15 : vector<512x32xf32>
    %c0_12 = arith.constant 0 : index
    %c0_13 = arith.constant 0 : index
    %17 = vector.load %arg6[%c0_12, %c0_13] : memref<1x32xf32, #tpu.memory_space<vmem>>, vector<1x32xf32>
    %18 = vector.broadcast %17 : vector<1x32xf32> to vector<512x32xf32>
    %19 = arith.mulf %16, %18 : vector<512x32xf32>
    %cst_14 = arith.constant dense<0.000000e+00> : vector<512xf32>
    %20 = vector.multi_reduction <add>, %19, %cst_14 [1] : vector<512x32xf32> to vector<512xf32>
    %21 = vector.shape_cast %20 : vector<512xf32> to vector<512x1xf32>
    %c0_15 = arith.constant 0 : index
    %c0_16 = arith.constant 0 : index
    %22 = vector.load %arg7[%c0_15, %c0_16] : memref<1x1xf32, #tpu.memory_space<vmem>>, vector<1x1xf32>
    %23 = vector.broadcast %22 : vector<1x1xf32> to vector<512x1xf32>
    %24 = arith.addf %21, %23 : vector<512x1xf32>
    %25 = arith.negf %24 : vector<512x1xf32>
    %26 = math.exp %25 : vector<512x1xf32>
    %cst_17 = arith.constant 1.000000e+00 : f32
    %27 = vector.broadcast %cst_17 : f32 to vector<512x1xf32>
    %28 = arith.addf %27, %26 : vector<512x1xf32>
    %29 = arith.divf %27, %28 : vector<512x1xf32>
    %c0_18 = arith.constant 0 : index
    %c0_19 = arith.constant 0 : index
    %30 = vector.load %arg8[%c0_18, %c0_19] : memref<512x1xf32, #tpu.memory_space<vmem>>, vector<512x1xf32>
    tpu.vector_store %arg8[%c0_18, %c0_19], %29 {strides = array<i32>} : memref<512x1xf32, #tpu.memory_space<vmem>>, vector<512x1xf32>,
    return
  }
  func.func @transform_0(%arg0: i32) -> (i32, i32) {
    %c0_i32 = arith.constant 0 : i32
    %c0_i32_0 = arith.constant 0 : i32
    return %arg0, %c0_i32 : i32, i32
  }
  func.func @transform_1(%arg0: i32) -> (i32, i32) {
    %c0_i32 = arith.constant 0 : i32
    %c0_i32_0 = arith.constant 0 : i32
    %c0_i32_1 = arith.constant 0 : i32
    return %c0_i32, %c0_i32_0 : i32, i32
  }
  func.func @transform_2(%arg0: i32) -> (i32, i32) {
    %c0_i32 = arith.constant 0 : i32
    %c0_i32_0 = arith.constant 0 : i32
    %c0_i32_1 = arith.constant 0 : i32
    return %c0_i32, %c0_i32_0 : i32, i32
  }
  func.func @transform_3(%arg0: i32) -> (i32, i32) {
    %c0_i32 = arith.constant 0 : i32
    %c0_i32_0 = arith.constant 0 : i32
    %c0_i32_1 = arith.constant 0 : i32
    return %c0_i32, %c0_i32_0 : i32, i32
  }
  func.func @transform_4(%arg0: i32) -> (i32, i32) {
    %c0_i32 = arith.constant 0 : i32
    %c0_i32_0 = arith.constant 0 : i32
    %c0_i32_1 = arith.constant 0 : i32
    return %c0_i32, %c0_i32_0 : i32, i32
  }
  func.func @transform_5(%arg0: i32) -> (i32, i32) {
    %c0_i32 = arith.constant 0 : i32
    %c0_i32_0 = arith.constant 0 : i32
    %c0_i32_1 = arith.constant 0 : i32
    return %c0_i32, %c0_i32_0 : i32, i32
  }
  func.func @transform_6(%arg0: i32) -> (i32, i32) {
    %c0_i32 = arith.constant 0 : i32
    %c0_i32_0 = arith.constant 0 : i32
    %c0_i32_1 = arith.constant 0 : i32
    return %c0_i32, %c0_i32_0 : i32, i32
  }
  func.func @transform_7(%arg0: i32) -> (i32, i32) {
    %c0_i32 = arith.constant 0 : i32
    %c0_i32_0 = arith.constant 0 : i32
    return %arg0, %c0_i32 : i32, i32
  }
}

</mosaic_0001>

<llo_original>
// kernel: tpu_custom_call.1
$region0: #{tpu_custom_call.1}
  #allocation0 [shape = 'u32[]', space=smem, size = 0x4, offset = 0x4, fixed_abs, tag = 'smem constant byte address 0x4 - core index']
  #allocation1 [shape = 'u32[72,128]{1,0:T(1,128)}', space=vmem, size = 0x9000, scoped, tag = 'internal scratch']
  #allocation2 [shape = 'f32[1,1]{1,0:T(1,128)S(1)}', space=vmem, size = 0x200, scoped, tag = 'scoped memory for tpu_custom_call.1']
  %s0 = inlined_call_operand.vmem [shape: f32[1024,25], index: 0, kind: input, shape index: {}]
  %s1 = inlined_call_operand.vmem [shape: bf16[25,64], index: 1, kind: input, shape index: {}]
  %s2 = inlined_call_operand.vmem [shape: f32[1,64], index: 2, kind: input, shape index: {}]
  %s3 = inlined_call_operand.vmem [shape: bf16[64,32], index: 3, kind: input, shape index: {}]
  %s4 = inlined_call_operand.vmem [shape: f32[1,32], index: 4, kind: input, shape index: {}]
  %s5 = inlined_call_operand.vmem [shape: f32[1,32], index: 5, kind: input, shape index: {}]
  %s6 = inlined_call_operand.<no memory space> [shape: f32[1,1], index: 6, kind: input, shape index: {}]
  %s7 = inlined_call_operand.vmem [shape: f32[1024,1], index: 7, kind: output, shape index: {}]
  %s8 = sld [smem:[#allocation0]]
  $region61: #{tpu_custom_call.1} parent=0
    _
  %s10 = ssub.s32 1, %s8
  %s11 = scalar_select 0, %s10, %s8
  %v12 = vstv %s6
  %13 = vst [vmem:[#allocation2] sm:$0x1] %v12
  loop: start=0, step=1, limit=4
  $region2: #{tpu_custom_call.1} parent=0 // loop_pre_header
    _
  $region3: #{tpu_custom_call.1} parent=0 // loop_header
    %s15 = sphi 0, %s19
    %p16 = scmp.ge.s32.totalorder %s15, 4
    %s25 = sphi 0, %s27
    %s28 = sphi 0, %s25
    %s29 = sphi 0, %s28
    %s45 = sphi 0, %s29
    %s49 = sphi 0, %s49
    %s51 = sphi 0, %s49
    %s52 = sphi 0, %s51
    %s66 = sphi 0, %s52
    %s70 = sphi 0, %s70
    %s72 = sphi 0, %s70
    %s73 = sphi 0, %s72
    %s87 = sphi 0, %s73
    %s91 = sphi 0, %s91
    %s93 = sphi 0, %s91
    %s94 = sphi 0, %s93
    %s108 = sphi 0, %s94
    %s112 = sphi 0, %s112
    %s114 = sphi 0, %s112
    %s115 = sphi 0, %s114
    %s129 = sphi 0, %s115
    %s133 = sphi 0, %s133
    %s135 = sphi 0, %s133
    %s136 = sphi 0, %s135
    %s150 = sphi 0, %s136
    %s154 = sphi 0, %s154
    %s156 = sphi 0, %s154
    %s157 = sphi 0, %s156
    %s171 = sphi 0, %s157
    %s177 = sphi 0, %s179
    %s180 = sphi 0, %s177
    %s181 = sphi 0, %s180
    %s197 = sphi 0, %s181
  $region4: #{tpu_custom_call.1} parent=0 // loop_header_branch
    %18 = sbr.rel (%p16) target = $region8
  $region5: #{tpu_custom_call.1} parent=0 // loop_body
    %s20 = ssub.s32 %s15, 1
    %s21 = ssub.s32 %s15, 2
    %s22 = sadd.s32 %s15, 1
    %s23 = ssub.s32 %s15, %s22
    %p24 = scmp.eq.s32.totalorder %s23, 0
    %s26 = sadd.s32 %s25, 1
    %s27 = scalar_select %p24, %s25, %s26
    %p30 = pneg %p24
    %p31 = scmp.eq.s32.totalorder %s15, 1
    %p32 = por %p30, %p31
    %p33 = scmp.ne.s32.totalorder %s25, %s28
    %p34 = scmp.eq.s32.totalorder %s15, 0
    %p35 = por %p33, %p34
    %p36 = scmp.ne.s32.totalorder %s25, %s28
    %p37 = scmp.eq.s32.totalorder %s20, 1
    %p38 = por %p36, %p37
    %p39 = scmp.ne.s32.totalorder %s28, %s29
    %p40 = scmp.eq.s32.totalorder %s20, 0
    %p41 = por %p39, %p40
    %p42 = scmp.ne.s32.totalorder %s28, %s29
    %p43 = scmp.eq.s32.totalorder %s21, 1
    %p44 = por %p42, %p43
    %p46 = scmp.ne.s32.totalorder %s29, %s45
    %p47 = scmp.eq.s32.totalorder %s21, 0
    %p48 = por %p46, %p47
    %s50 = sadd.s32 %s49, 1
    %p53 = scmp.eq.s32.totalorder %s15, 1
    %p54 = scmp.ne.s32.totalorder %s49, %s51
    %p55 = scmp.eq.s32.totalorder %s15, 0
    %p56 = por %p54, %p55
    %p57 = scmp.ne.s32.totalorder %s49, %s51
    %p58 = scmp.eq.s32.totalorder %s20, 1
    %p59 = por %p57, %p58
    %p60 = scmp.ne.s32.totalorder %s51, %s52
    %p61 = scmp.eq.s32.totalorder %s20, 0
    %p62 = por %p60, %p61
    %p63 = scmp.ne.s32.totalorder %s51, %s52
    %p64 = scmp.eq.s32.totalorder %s21, 1
    %p65 = por %p63, %p64
    %p67 = scmp.ne.s32.totalorder %s52, %s66
    %p68 = scmp.eq.s32.totalorder %s21, 0
    %p69 = por %p67, %p68
    %s71 = sadd.s32 %s70, 1
    %p74 = scmp.eq.s32.totalorder %s15, 1
    %p75 = scmp.ne.s32.totalorder %s70, %s72
    %p76 = scmp.eq.s32.totalorder %s15, 0
    %p77 = por %p75, %p76
    %p78 = scmp.ne.s32.totalorder %s70, %s72
    %p79 = scmp.eq.s32.totalorder %s20, 1
    %p80 = por %p78, %p79
    %p81 = scmp.ne.s32.totalorder %s72, %s73
    %p82 = scmp.eq.s32.totalorder %s20, 0
    %p83 = por %p81, %p82
    %p84 = scmp.ne.s32.totalorder %s72, %s73
    %p85 = scmp.eq.s32.totalorder %s21, 1
    %p86 = por %p84, %p85
    %p88 = scmp.ne.s32.totalorder %s73, %s87
    %p89 = scmp.eq.s32.totalorder %s21, 0
    %p90 = por %p88, %p89
    %s92 = sadd.s32 %s91, 1
    %p95 = scmp.eq.s32.totalorder %s15, 1
    %p96 = scmp.ne.s32.totalorder %s91, %s93
    %p97 = scmp.eq.s32.totalorder %s15, 0
    %p98 = por %p96, %p97
    %p99 = scmp.ne.s32.totalorder %s91, %s93
    %p100 = scmp.eq.s32.totalorder %s20, 1
    %p101 = por %p99, %p100
    %p102 = scmp.ne.s32.totalorder %s93, %s94
    %p103 = scmp.eq.s32.totalorder %s20, 0
    %p104 = por %p102, %p103
    %p105 = scmp.ne.s32.totalorder %s93, %s94
    %p106 = scmp.eq.s32.totalorder %s21, 1
    %p107 = por %p105, %p106
    %p109 = scmp.ne.s32.totalorder %s94, %s108
    %p110 = scmp.eq.s32.totalorder %s21, 0
    %p111 = por %p109, %p110
    %s113 = sadd.s32 %s112, 1
    %p116 = scmp.eq.s32.totalorder %s15, 1
    %p117 = scmp.ne.s32.totalorder %s112, %s114
    %p118 = scmp.eq.s32.totalorder %s15, 0
    %p119 = por %p117, %p118
    %p120 = scmp.ne.s32.totalorder %s112, %s114
    %p121 = scmp.eq.s32.totalorder %s20, 1
    %p122 = por %p120, %p121
    %p123 = scmp.ne.s32.totalorder %s114, %s115
    %p124 = scmp.eq.s32.totalorder %s20, 0
    %p125 = por %p123, %p124
    %p126 = scmp.ne.s32.totalorder %s114, %s115
    %p127 = scmp.eq.s32.totalorder %s21, 1
    %p128 = por %p126, %p127
    %p130 = scmp.ne.s32.totalorder %s115, %s129
    %p131 = scmp.eq.s32.totalorder %s21, 0
    %p132 = por %p130, %p131
    %s134 = sadd.s32 %s133, 1
    %p137 = scmp.eq.s32.totalorder %s15, 1
    %p138 = scmp.ne.s32.totalorder %s133, %s135
    %p139 = scmp.eq.s32.totalorder %s15, 0
    %p140 = por %p138, %p139
    %p141 = scmp.ne.s32.totalorder %s133, %s135
    %p142 = scmp.eq.s32.totalorder %s20, 1
    %p143 = por %p141, %p142
    %p144 = scmp.ne.s32.totalorder %s135, %s136
    %p145 = scmp.eq.s32.totalorder %s20, 0
    %p146 = por %p144, %p145
    %p147 = scmp.ne.s32.totalorder %s135, %s136
    %p148 = scmp.eq.s32.totalorder %s21, 1
    %p149 = por %p147, %p148
    %p151 = scmp.ne.s32.totalorder %s136, %s150
    %p152 = scmp.eq.s32.totalorder %s21, 0
    %p153 = por %p151, %p152
    %s155 = sadd.s32 %s154, 1
    %p158 = scmp.eq.s32.totalorder %s15, 1
    %p159 = scmp.ne.s32.totalorder %s154, %s156
    %p160 = scmp.eq.s32.totalorder %s15, 0
    %p161 = por %p159, %p160
    %p162 = scmp.ne.s32.totalorder %s154, %s156
    %p163 = scmp.eq.s32.totalorder %s20, 1
    %p164 = por %p162, %p163
    %p165 = scmp.ne.s32.totalorder %s156, %s157
    %p166 = scmp.eq.s32.totalorder %s20, 0
    %p167 = por %p165, %p166
    %p168 = scmp.ne.s32.totalorder %s156, %s157
    %p169 = scmp.eq.s32.totalorder %s21, 1
    %p170 = por %p168, %p169
    %p172 = scmp.ne.s32.totalorder %s157, %s171
    %p173 = scmp.eq.s32.totalorder %s21, 0
    %p174 = por %p172, %p173
    %s175 = ssub.s32 %s15, %s22
    %p176 = scmp.eq.s32.totalorder %s175, 0
    %s178 = sadd.s32 %s177, 1
    %s179 = scalar_select %p176, %s177, %s178
    %p182 = pneg %p176
    %p183 = scmp.eq.s32.totalorder %s15, 1
    %p184 = por %p182, %p183
    %p185 = scmp.ne.s32.totalorder %s177, %s180
    %p186 = scmp.eq.s32.totalorder %s15, 0
    %p187 = por %p185, %p186
    %p188 = scmp.ne.s32.totalorder %s177, %s180
    %p189 = scmp.eq.s32.totalorder %s20, 1
    %p190 = por %p188, %p189
    %p191 = scmp.ne.s32.totalorder %s180, %s181
    %p192 = scmp.eq.s32.totalorder %s20, 0
    %p193 = por %p191, %p192
    %p194 = scmp.ne.s32.totalorder %s180, %s181
    %p195 = scmp.eq.s32.totalorder %s21, 1
    %p196 = por %p194, %p195
    %p198 = scmp.ne.s32.totalorder %s181, %s197
    %p199 = scmp.eq.s32.totalorder %s21, 0
    %p200 = por %p198, %p199
    %p201 = scmp.le.s32.totalorder 1, %s15
    %p202 = scmp.lt.s32.totalorder %s15, 3
    %p203 = pnand %p201, %p202
    %p204 = pneg %p203
    // Predicated region
    $region9: #{tpu_custom_call.1} parent=5 // pred_check
      _
    $region10: #{tpu_custom_call.1} parent=5 // pred_check_branch
      %206 = sbr.rel (%p203) target = $region12
    $region11: #{tpu_custom_call.1} parent=5 // pred_region
      %s207 = ssub.s32 %s15, 1
      // Predicated region
      $region13: #{tpu_custom_call.1} parent=11 // pred_check
        %p208 = pneg %p62
      $region14: #{tpu_custom_call.1} parent=11 // pred_check_branch
        %210 = sbr.rel (%p208) target = $region16
      $region15: #{tpu_custom_call.1} parent=11 // pred_region
        _
      $region16: #{tpu_custom_call.1} parent=11 // pred_fallthru
        _
      // Predicated region
      $region17: #{tpu_custom_call.1} parent=11 // pred_check
        %p211 = pneg %p83
      $region18: #{tpu_custom_call.1} parent=11 // pred_check_branch
        %213 = sbr.rel (%p211) target = $region20
      $region19: #{tpu_custom_call.1} parent=11 // pred_region
        _
      $region20: #{tpu_custom_call.1} parent=11 // pred_fallthru
        _
      // Predicated region
      $region21: #{tpu_custom_call.1} parent=11 // pred_check
        %p214 = pneg %p104
      $region22: #{tpu_custom_call.1} parent=11 // pred_check_branch
        %216 = sbr.rel (%p214) target = $region24
      $region23: #{tpu_custom_call.1} parent=11 // pred_region
        _
      $region24: #{tpu_custom_call.1} parent=11 // pred_fallthru
        _
      // Predicated region
      $region25: #{tpu_custom_call.1} parent=11 // pred_check
        %p217 = pneg %p125
      $region26: #{tpu_custom_call.1} parent=11 // pred_check_branch
        %219 = sbr.rel (%p217) target = $region28
      $region27: #{tpu_custom_call.1} parent=11 // pred_region
        _
      $region28: #{tpu_custom_call.1} parent=11 // pred_fallthru
        _
      // Predicated region
      $region29: #{tpu_custom_call.1} parent=11 // pred_check
        %p220 = pneg %p146
      $region30: #{tpu_custom_call.1} parent=11 // pred_check_branch
        %222 = sbr.rel (%p220) target = $region32
      $region31: #{tpu_custom_call.1} parent=11 // pred_region
        _
      $region32: #{tpu_custom_call.1} parent=11 // pred_fallthru
        _
      // Predicated region
      $region33: #{tpu_custom_call.1} parent=11 // pred_check
        %p223 = pneg %p167
      $region34: #{tpu_custom_call.1} parent=11 // pred_check_branch
        %225 = sbr.rel (%p223) target = $region36
      $region35: #{tpu_custom_call.1} parent=11 // pred_region
        _
      $region36: #{tpu_custom_call.1} parent=11 // pred_fallthru
        _
    $region12: #{tpu_custom_call.1} parent=5 // pred_fallthru
      _
    %p226 = scmp.lt.s32.totalorder %s15, 2
    // Predicated region
    $region37: #{tpu_custom_call.1} parent=5 // pred_check
      %p227 = pneg %p226
    $region38: #{tpu_custom_call.1} parent=5 // pred_check_branch
      %229 = sbr.rel (%p227) target = $region40
    $region39: #{tpu_custom_call.1} parent=5 // pred_region
      // Predicated region
      $region41: #{tpu_custom_call.1} parent=39 // pred_check
        %p230 = pneg %p35
      $region42: #{tpu_custom_call.1} parent=39 // pred_check_branch
        %232 = sbr.rel (%p230) target = $region44
      $region43: #{tpu_custom_call.1} parent=39 // pred_region
        %s233 = smul.u32 64, %s15
        %p234 = scmp.lt.s32.totalorder %s233, 127
        %s235 = scalar_select %p234, %s233, 127
        %s236 = smul.addr %s235, 8
        %s237 = scalar_lea.vmem %s0, %s236
        %s238 = smul.u32 64, %s15
      $region44: #{tpu_custom_call.1} parent=39 // pred_fallthru
        _
    $region40: #{tpu_custom_call.1} parent=5 // pred_fallthru
      _
    %p239 = scmp.le.s32.totalorder 1, %s15
    %p240 = scmp.lt.s32.totalorder %s15, 3
    %p241 = pnand %p239, %p240
    %p242 = pneg %p241
    // Predicated region
    $region45: #{tpu_custom_call.1} parent=5 // pred_check
      _
    $region46: #{tpu_custom_call.1} parent=5 // pred_check_branch
      %244 = sbr.rel (%p241) target = $region48
    $region47: #{tpu_custom_call.1} parent=5 // pred_region
      %s245 = ssub.s32 %s15, 1
      %s246 = smul.u32 64, %s20
      %p247 = scmp.lt.s32.totalorder %s246, 127
      %s248 = scalar_select %p247, %s246, 127
      %s249 = smul.addr %s248, 8
      %s250 = scalar_lea.vmem %s0, %s249
      %p251 = pneg %p41
      %p252 = pneg %p38
      %p253 = pneg %p62
      %p254 = pneg %p59
      %p255 = pneg %p83
      %p256 = pneg %p80
      %p257 = pneg %p104
      %p258 = pneg %p101
      %p259 = pneg %p125
      %p260 = pneg %p122
      %p261 = pneg %p146
      %p262 = pneg %p143
      %p263 = pneg %p167
      %p264 = pneg %p164
      %p265 = pneg %p193
      %p266 = pneg %p190
      %s267 = smul.u32 64, %s20
      %p268 = scmp.lt.s32.totalorder %s267, 127
      %s269 = scalar_select %p268, %s267, 127
      %s270 = smul.addr %s269, 8
      %s271 = scalar_lea.vmem %s7, %s270
      %s272 = smul.u32 64, %s20
      %p273 = scmp.lt.s32.totalorder %s272, 127
      %s274 = scalar_select %p273, %s272, 127
      %s275 = smul.addr %s274, 8
      %s276 = scalar_lea.vmem %s0, %s275
      %s277 = smul.u32 64, %s20
      %s278 = smul.u32 64, %s20
      %p279 = scmp.lt.s32.totalorder %s278, 127
      %s280 = scalar_select %p279, %s278, 127
      %s281 = smul.addr %s280, 8
      %s282 = scalar_lea.vmem %s7, %s281
      %s283 = smul.u32 64, %s20
      %v285 = vld [vmem:[%s276] sm:$0xff]
      %v286 = vld [vmem:[%s276 + $0x8] sm:$0xff]
      %v287 = vld [vmem:[%s276 + $0x10] sm:$0xff]
      %v288 = vld [vmem:[%s276 + $0x18] sm:$0xff]
      %v289 = vld [vmem:[%s276 + $0x20] sm:$0xff]
      %v290 = vld [vmem:[%s276 + $0x28] sm:$0xff]
      %v291 = vld [vmem:[%s276 + $0x30] sm:$0xff]
      %v292 = vld [vmem:[%s276 + $0x38] sm:$0xff]
      %v293 = vld [vmem:[%s276 + $0x40] sm:$0xff]
      %v294 = vld [vmem:[%s276 + $0x48] sm:$0xff]
      %v295 = vld [vmem:[%s276 + $0x50] sm:$0xff]
      %v296 = vld [vmem:[%s276 + $0x58] sm:$0xff]
      %v297 = vld [vmem:[%s276 + $0x60] sm:$0xff]
      %v298 = vld [vmem:[%s276 + $0x68] sm:$0xff]
      %v299 = vld [vmem:[%s276 + $0x70] sm:$0xff]
      %v300 = vld [vmem:[%s276 + $0x78] sm:$0xff]
      %v301 = vld [vmem:[%s276 + $0x80] sm:$0xff]
      %v302 = vld [vmem:[%s276 + $0x88] sm:$0xff]
      %v303 = vld [vmem:[%s276 + $0x90] sm:$0xff]
      %v304 = vld [vmem:[%s276 + $0x98] sm:$0xff]
      %v305 = vld [vmem:[%s276 + $0xa0] sm:$0xff]
      %v306 = vld [vmem:[%s276 + $0xa8] sm:$0xff]
      %v307 = vld [vmem:[%s276 + $0xb0] sm:$0xff]
      %v308 = vld [vmem:[%s276 + $0xb8] sm:$0xff]
      %v309 = vld [vmem:[%s276 + $0xc0] sm:$0xff]
      %v310 = vld [vmem:[%s276 + $0xc8] sm:$0xff]
      %v311 = vld [vmem:[%s276 + $0xd0] sm:$0xff]
      %v312 = vld [vmem:[%s276 + $0xd8] sm:$0xff]
      %v313 = vld [vmem:[%s276 + $0xe0] sm:$0xff]
      %v314 = vld [vmem:[%s276 + $0xe8] sm:$0xff]
      %v315 = vld [vmem:[%s276 + $0xf0] sm:$0xff]
      %v316 = vld [vmem:[%s276 + $0xf8] sm:$0xff]
      %v317 = vld [vmem:[%s276 + $0x100] sm:$0xff]
      %v318 = vld [vmem:[%s276 + $0x108] sm:$0xff]
      %v319 = vld [vmem:[%s276 + $0x110] sm:$0xff]
      %v320 = vld [vmem:[%s276 + $0x118] sm:$0xff]
      %v321 = vld [vmem:[%s276 + $0x120] sm:$0xff]
      %v322 = vld [vmem:[%s276 + $0x128] sm:$0xff]
      %v323 = vld [vmem:[%s276 + $0x130] sm:$0xff]
      %v324 = vld [vmem:[%s276 + $0x138] sm:$0xff]
      %v325 = vld [vmem:[%s276 + $0x140] sm:$0xff]
      %v326 = vld [vmem:[%s276 + $0x148] sm:$0xff]
      %v327 = vld [vmem:[%s276 + $0x150] sm:$0xff]
      %v328 = vld [vmem:[%s276 + $0x158] sm:$0xff]
      %v329 = vld [vmem:[%s276 + $0x160] sm:$0xff]
      %v330 = vld [vmem:[%s276 + $0x168] sm:$0xff]
      %v331 = vld [vmem:[%s276 + $0x170] sm:$0xff]
      %v332 = vld [vmem:[%s276 + $0x178] sm:$0xff]
      %v333 = vld [vmem:[%s276 + $0x180] sm:$0xff]
      %v334 = vld [vmem:[%s276 + $0x188] sm:$0xff]
      %v335 = vld [vmem:[%s276 + $0x190] sm:$0xff]
      %v336 = vld [vmem:[%s276 + $0x198] sm:$0xff]
      %v337 = vld [vmem:[%s276 + $0x1a0] sm:$0xff]
      %v338 = vld [vmem:[%s276 + $0x1a8] sm:$0xff]
      %v339 = vld [vmem:[%s276 + $0x1b0] sm:$0xff]
      %v340 = vld [vmem:[%s276 + $0x1b8] sm:$0xff]
      %v341 = vld [vmem:[%s276 + $0x1c0] sm:$0xff]
      %v342 = vld [vmem:[%s276 + $0x1c8] sm:$0xff]
      %v343 = vld [vmem:[%s276 + $0x1d0] sm:$0xff]
      %v344 = vld [vmem:[%s276 + $0x1d8] sm:$0xff]
      %v345 = vld [vmem:[%s276 + $0x1e0] sm:$0xff]
      %v346 = vld [vmem:[%s276 + $0x1e8] sm:$0xff]
      %v347 = vld [vmem:[%s276 + $0x1f0] sm:$0xff]
      %v348 = vld [vmem:[%s276 + $0x1f8] sm:$0xff]
      %v349 = vpack.c.bf16 %v286, %v285
      %v350 = vpack.c.bf16 %v288, %v287
      %v351 = vpack.c.bf16 %v290, %v289
      %v352 = vpack.c.bf16 %v292, %v291
      %v353 = vpack.c.bf16 %v294, %v293
      %v354 = vpack.c.bf16 %v296, %v295
      %v355 = vpack.c.bf16 %v298, %v297
      %v356 = vpack.c.bf16 %v300, %v299
      %v357 = vpack.c.bf16 %v302, %v301
      %v358 = vpack.c.bf16 %v304, %v303
      %v359 = vpack.c.bf16 %v306, %v305
      %v360 = vpack.c.bf16 %v308, %v307
      %v361 = vpack.c.bf16 %v310, %v309
      %v362 = vpack.c.bf16 %v312, %v311
      %v363 = vpack.c.bf16 %v314, %v313
      %v364 = vpack.c.bf16 %v316, %v315
      %v365 = vpack.c.bf16 %v318, %v317
      %v366 = vpack.c.bf16 %v320, %v319
      %v367 = vpack.c.bf16 %v322, %v321
      %v368 = vpack.c.bf16 %v324, %v323
      %v369 = vpack.c.bf16 %v326, %v325
      %v370 = vpack.c.bf16 %v328, %v327
      %v371 = vpack.c.bf16 %v330, %v329
      %v372 = vpack.c.bf16 %v332, %v331
      %v373 = vpack.c.bf16 %v334, %v333
      %v374 = vpack.c.bf16 %v336, %v335
      %v375 = vpack.c.bf16 %v338, %v337
      %v376 = vpack.c.bf16 %v340, %v339
      %v377 = vpack.c.bf16 %v342, %v341
      %v378 = vpack.c.bf16 %v344, %v343
      %v379 = vpack.c.bf16 %v346, %v345
      %v380 = vpack.c.bf16 %v348, %v347
      %v381 = vld [vmem:[%s1] sm:$0xf]
      %v382 = vld [vmem:[%s1 + $0x4] sm:$0xf]
      %v383 = vld [vmem:[%s1 + $0x8] sm:$0xf]
      %v384 = vld [vmem:[%s1 + $0xc] sm:$0x1]
      %v385 = vld [vmem:[%s2] sm:$0x1]
      %v387 = vperm.slane %v385, 0
      %v393 = vunpack.c.l.b16 %v381
      %v394 = vunpack.c.l.b16 %v382
      %v395 = vunpack.c.l.b16 %v383
      %v396 = vunpack.c.l.b16 %v384
      %v397 = vpack.c.b16 %v394, %v393
      %v398 = vpack.c.b16 %v396, %v395
      %vm400 = vcmask 203776
      %v402 = vsel %vm400, %v349, 0
      %v405 = vsel %vm400, %v350, 0
      %v408 = vsel %vm400, %v351, 0
      %v411 = vsel %vm400, %v352, 0
      %v414 = vsel %vm400, %v353, 0
      %v417 = vsel %vm400, %v354, 0
      %v420 = vsel %vm400, %v355, 0
      %v423 = vsel %vm400, %v356, 0
      %v426 = vsel %vm400, %v357, 0
      %v429 = vsel %vm400, %v358, 0
      %v432 = vsel %vm400, %v359, 0
      %v435 = vsel %vm400, %v360, 0
      %v438 = vsel %vm400, %v361, 0
      %v441 = vsel %vm400, %v362, 0
      %v444 = vsel %vm400, %v363, 0
      %v447 = vsel %vm400, %v364, 0
      %v450 = vsel %vm400, %v365, 0
      %v453 = vsel %vm400, %v366, 0
      %v456 = vsel %vm400, %v367, 0
      %v459 = vsel %vm400, %v368, 0
      %v462 = vsel %vm400, %v369, 0
      %v465 = vsel %vm400, %v370, 0
      %v468 = vsel %vm400, %v371, 0
      %v471 = vsel %vm400, %v372, 0
      %v474 = vsel %vm400, %v373, 0
      %v477 = vsel %vm400, %v374, 0
      %v480 = vsel %vm400, %v375, 0
      %v483 = vsel %vm400, %v376, 0
      %v486 = vsel %vm400, %v377, 0
      %v489 = vsel %vm400, %v378, 0
      %v492 = vsel %vm400, %v379, 0
      %v495 = vsel %vm400, %v380, 0
      %vm497 = vcmask 1043456
      %vm498 = vcmask 1044480
      %v499 = vsel %vm497, 4294967295, 65535
      %v500 = vsel %vm498, %v499, 0
      %v502 = vand.u32 %v398, %v500
      %504 = vmatpush.bf16.msra.mxu0 0
      %505 = vmatpush.bf16.msra.mxu0 0
      %506 = vmatpush.bf16.msra.mxu0 0
      %507 = vmatpush.bf16.msra.mxu0 0
      %508 = vmatpush.bf16.msra.mxu0 0
      %509 = vmatpush.bf16.msra.mxu0 0
      %510 = vmatpush.bf16.msra.mxu0 %v502
      %511 = vmatpush.bf16.msra.mxu0 %v397
      %512 = vmatmul.bf16.gmra.mxu0 %v402
      %v513 = vpop.f32.mrf.mxu0
      %v514 = vadd.f32 %v387, %v513
      %v515 = vpop.f32.mrf.mxu0
      %v516 = vadd.f32 %v387, %v515
      %517 = vmatmul.bf16.gmra.mxu0 %v405
      %v518 = vpop.f32.mrf.mxu0
      %v519 = vadd.f32 %v387, %v518
      %v520 = vpop.f32.mrf.mxu0
      %v521 = vadd.f32 %v387, %v520
      %522 = vmatmul.bf16.gmra.mxu0 %v408
      %v523 = vpop.f32.mrf.mxu0
      %v524 = vadd.f32 %v387, %v523
      %v525 = vpop.f32.mrf.mxu0
      %v526 = vadd.f32 %v387, %v525
      %527 = vmatmul.bf16.gmra.mxu0 %v411
      %v528 = vpop.f32.mrf.mxu0
      %v529 = vadd.f32 %v387, %v528
      %v530 = vpop.f32.mrf.mxu0
      %v531 = vadd.f32 %v387, %v530
      %532 = vmatmul.bf16.gmra.mxu0 %v414
      %v533 = vpop.f32.mrf.mxu0
      %v534 = vadd.f32 %v387, %v533
      %v535 = vpop.f32.mrf.mxu0
      %v536 = vadd.f32 %v387, %v535
      %537 = vmatmul.bf16.gmra.mxu0 %v417
      %v538 = vpop.f32.mrf.mxu0
      %v539 = vadd.f32 %v387, %v538
      %v540 = vpop.f32.mrf.mxu0
      %v541 = vadd.f32 %v387, %v540
      %542 = vmatmul.bf16.gmra.mxu0 %v420
      %v543 = vpop.f32.mrf.mxu0
      %v544 = vadd.f32 %v387, %v543
      %v545 = vpop.f32.mrf.mxu0
      %v546 = vadd.f32 %v387, %v545
      %547 = vmatmul.bf16.gmra.mxu0 %v423
      %v548 = vpop.f32.mrf.mxu0
      %v549 = vadd.f32 %v387, %v548
      %v550 = vpop.f32.mrf.mxu0
      %v551 = vadd.f32 %v387, %v550
      %552 = vmatmul.bf16.gmra.mxu0 %v426
      %v553 = vpop.f32.mrf.mxu0
      %v554 = vadd.f32 %v387, %v553
      %v555 = vpop.f32.mrf.mxu0
      %v556 = vadd.f32 %v387, %v555
      %557 = vmatmul.bf16.gmra.mxu0 %v429
      %v558 = vpop.f32.mrf.mxu0
      %v559 = vadd.f32 %v387, %v558
      %v560 = vpop.f32.mrf.mxu0
      %v561 = vadd.f32 %v387, %v560
      %562 = vmatmul.bf16.gmra.mxu0 %v432
      %v563 = vpop.f32.mrf.mxu0
      %v564 = vadd.f32 %v387, %v563
      %v565 = vpop.f32.mrf.mxu0
      %v566 = vadd.f32 %v387, %v565
      %567 = vmatmul.bf16.gmra.mxu0 %v435
      %v568 = vpop.f32.mrf.mxu0
      %v569 = vadd.f32 %v387, %v568
      %v570 = vpop.f32.mrf.mxu0
      %v571 = vadd.f32 %v387, %v570
      %572 = vmatmul.bf16.gmra.mxu0 %v438
      %v573 = vpop.f32.mrf.mxu0
      %v574 = vadd.f32 %v387, %v573
      %v575 = vpop.f32.mrf.mxu0
      %v576 = vadd.f32 %v387, %v575
      %577 = vmatmul.bf16.gmra.mxu0 %v441
      %v578 = vpop.f32.mrf.mxu0
      %v579 = vadd.f32 %v387, %v578
      %v580 = vpop.f32.mrf.mxu0
      %v581 = vadd.f32 %v387, %v580
      %582 = vmatmul.bf16.gmra.mxu0 %v444
      %v583 = vpop.f32.mrf.mxu0
      %v584 = vadd.f32 %v387, %v583
      %v585 = vpop.f32.mrf.mxu0
      %v586 = vadd.f32 %v387, %v585
      %587 = vmatmul.bf16.gmra.mxu0 %v447
      %v588 = vpop.f32.mrf.mxu0
      %v589 = vadd.f32 %v387, %v588
      %v590 = vpop.f32.mrf.mxu0
      %v591 = vadd.f32 %v387, %v590
      %592 = vmatmul.bf16.gmra.mxu0 %v450
      %v593 = vpop.f32.mrf.mxu0
      %v594 = vadd.f32 %v387, %v593
      %v595 = vpop.f32.mrf.mxu0
      %v596 = vadd.f32 %v387, %v595
      %597 = vmatmul.bf16.gmra.mxu0 %v453
      %v598 = vpop.f32.mrf.mxu0
      %v599 = vadd.f32 %v387, %v598
      %v600 = vpop.f32.mrf.mxu0
      %v601 = vadd.f32 %v387, %v600
      %602 = vmatmul.bf16.gmra.mxu0 %v456
      %v603 = vpop.f32.mrf.mxu0
      %v604 = vadd.f32 %v387, %v603
      %v605 = vpop.f32.mrf.mxu0
      %v606 = vadd.f32 %v387, %v605
      %607 = vmatmul.bf16.gmra.mxu0 %v459
      %v608 = vpop.f32.mrf.mxu0
      %v609 = vadd.f32 %v387, %v608
      %v610 = vpop.f32.mrf.mxu0
      %v611 = vadd.f32 %v387, %v610
      %612 = vmatmul.bf16.gmra.mxu0 %v462
      %v613 = vpop.f32.mrf.mxu0
      %v614 = vadd.f32 %v387, %v613
      %v615 = vpop.f32.mrf.mxu0
      %v616 = vadd.f32 %v387, %v615
      %617 = vmatmul.bf16.gmra.mxu0 %v465
      %v618 = vpop.f32.mrf.mxu0
      %v619 = vadd.f32 %v387, %v618
      %v620 = vpop.f32.mrf.mxu0
      %v621 = vadd.f32 %v387, %v620
      %622 = vmatmul.bf16.gmra.mxu0 %v468
      %v623 = vpop.f32.mrf.mxu0
      %v624 = vadd.f32 %v387, %v623
      %v625 = vpop.f32.mrf.mxu0
      %v626 = vadd.f32 %v387, %v625
      %627 = vmatmul.bf16.gmra.mxu0 %v471
      %v628 = vpop.f32.mrf.mxu0
      %v629 = vadd.f32 %v387, %v628
      %v630 = vpop.f32.mrf.mxu0
      %v631 = vadd.f32 %v387, %v630
      %632 = vmatmul.bf16.gmra.mxu0 %v474
      %v633 = vpop.f32.mrf.mxu0
      %v634 = vadd.f32 %v387, %v633
      %v635 = vpop.f32.mrf.mxu0
      %v636 = vadd.f32 %v387, %v635
      %637 = vmatmul.bf16.gmra.mxu0 %v477
      %v638 = vpop.f32.mrf.mxu0
      %v639 = vadd.f32 %v387, %v638
      %v640 = vpop.f32.mrf.mxu0
      %v641 = vadd.f32 %v387, %v640
      %642 = vmatmul.bf16.gmra.mxu0 %v480
      %v643 = vpop.f32.mrf.mxu0
      %v644 = vadd.f32 %v387, %v643
      %v645 = vpop.f32.mrf.mxu0
      %v646 = vadd.f32 %v387, %v645
      %647 = vmatmul.bf16.gmra.mxu0 %v483
      %v648 = vpop.f32.mrf.mxu0
      %v649 = vadd.f32 %v387, %v648
      %v650 = vpop.f32.mrf.mxu0
      %v651 = vadd.f32 %v387, %v650
      %652 = vmatmul.bf16.gmra.mxu0 %v486
      %v653 = vpop.f32.mrf.mxu0
      %v654 = vadd.f32 %v387, %v653
      %v655 = vpop.f32.mrf.mxu0
      %v656 = vadd.f32 %v387, %v655
      %657 = vmatmul.bf16.gmra.mxu0 %v489
      %v658 = vpop.f32.mrf.mxu0
      %v659 = vadd.f32 %v387, %v658
      %v660 = vpop.f32.mrf.mxu0
      %v661 = vadd.f32 %v387, %v660
      %662 = vmatmul.bf16.gmra.mxu0 %v492
      %v663 = vpop.f32.mrf.mxu0
      %v664 = vadd.f32 %v387, %v663
      %v665 = vpop.f32.mrf.mxu0
      %v666 = vadd.f32 %v387, %v665
      %667 = vmatmul.bf16.gmra.mxu0 %v495
      %v668 = vpop.f32.mrf.mxu0
      %v669 = vadd.f32 %v387, %v668
      %v670 = vpop.f32.mrf.mxu0
      %v671 = vadd.f32 %v387, %v670
      %672 = vdwg.mxu0
      %v673 = vmax.f32 %v514, 0.0
      %v674 = vmax.f32 %v516, 0.0
      %v675 = vmax.f32 %v519, 0.0
      %v676 = vmax.f32 %v521, 0.0
      %v677 = vmax.f32 %v524, 0.0
      %v678 = vmax.f32 %v526, 0.0
      %v679 = vmax.f32 %v529, 0.0
      %v680 = vmax.f32 %v531, 0.0
      %v681 = vmax.f32 %v534, 0.0
      %v682 = vmax.f32 %v536, 0.0
      %v683 = vmax.f32 %v539, 0.0
      %v684 = vmax.f32 %v541, 0.0
      %v685 = vmax.f32 %v544, 0.0
      %v686 = vmax.f32 %v546, 0.0
      %v687 = vmax.f32 %v549, 0.0
      %v688 = vmax.f32 %v551, 0.0
      %v689 = vmax.f32 %v554, 0.0
      %v690 = vmax.f32 %v556, 0.0
      %v691 = vmax.f32 %v559, 0.0
      %v692 = vmax.f32 %v561, 0.0
      %v693 = vmax.f32 %v564, 0.0
      %v694 = vmax.f32 %v566, 0.0
      %v695 = vmax.f32 %v569, 0.0
      %v696 = vmax.f32 %v571, 0.0
      %v697 = vmax.f32 %v574, 0.0
      %v698 = vmax.f32 %v576, 0.0
      %v699 = vmax.f32 %v579, 0.0
      %v700 = vmax.f32 %v581, 0.0
      %v701 = vmax.f32 %v584, 0.0
      %v702 = vmax.f32 %v586, 0.0
      %v703 = vmax.f32 %v589, 0.0
      %v704 = vmax.f32 %v591, 0.0
      %v705 = vmax.f32 %v594, 0.0
      %v706 = vmax.f32 %v596, 0.0
      %v707 = vmax.f32 %v599, 0.0
      %v708 = vmax.f32 %v601, 0.0
      %v709 = vmax.f32 %v604, 0.0
      %v710 = vmax.f32 %v606, 0.0
      %v711 = vmax.f32 %v609, 0.0
      %v712 = vmax.f32 %v611, 0.0
      %v713 = vmax.f32 %v614, 0.0
      %v714 = vmax.f32 %v616, 0.0
      %v715 = vmax.f32 %v619, 0.0
      %v716 = vmax.f32 %v621, 0.0
      %v717 = vmax.f32 %v624, 0.0
      %v718 = vmax.f32 %v626, 0.0
      %v719 = vmax.f32 %v629, 0.0
      %v720 = vmax.f32 %v631, 0.0
      %v721 = vmax.f32 %v634, 0.0
      %v722 = vmax.f32 %v636, 0.0
      %v723 = vmax.f32 %v639, 0.0
      %v724 = vmax.f32 %v641, 0.0
      %v725 = vmax.f32 %v644, 0.0
      %v726 = vmax.f32 %v646, 0.0
      %v727 = vmax.f32 %v649, 0.0
      %v728 = vmax.f32 %v651, 0.0
      %v729 = vmax.f32 %v654, 0.0
      %v730 = vmax.f32 %v656, 0.0
      %v731 = vmax.f32 %v659, 0.0
      %v732 = vmax.f32 %v661, 0.0
      %v733 = vmax.f32 %v664, 0.0
      %v734 = vmax.f32 %v666, 0.0
      %v735 = vmax.f32 %v669, 0.0
      %v736 = vmax.f32 %v671, 0.0
      %v737 = vpack.c.bf16 %v674, %v673
      %v738 = vpack.c.bf16 %v676, %v675
      %v739 = vpack.c.bf16 %v678, %v677
      %v740 = vpack.c.bf16 %v680, %v679
      %v741 = vpack.c.bf16 %v682, %v681
      %v742 = vpack.c.bf16 %v684, %v683
      %v743 = vpack.c.bf16 %v686, %v685
      %v744 = vpack.c.bf16 %v688, %v687
      %v745 = vpack.c.bf16 %v690, %v689
      %v746 = vpack.c.bf16 %v692, %v691
      %v747 = vpack.c.bf16 %v694, %v693
      %v748 = vpack.c.bf16 %v696, %v695
      %v749 = vpack.c.bf16 %v698, %v697
      %v750 = vpack.c.bf16 %v700, %v699
      %v751 = vpack.c.bf16 %v702, %v701
      %v752 = vpack.c.bf16 %v704, %v703
      %v753 = vpack.c.bf16 %v706, %v705
      %v754 = vpack.c.bf16 %v708, %v707
      %v755 = vpack.c.bf16 %v710, %v709
      %v756 = vpack.c.bf16 %v712, %v711
      %v757 = vpack.c.bf16 %v714, %v713
      %v758 = vpack.c.bf16 %v716, %v715
      %v759 = vpack.c.bf16 %v718, %v717
      %v760 = vpack.c.bf16 %v720, %v719
      %v761 = vpack.c.bf16 %v722, %v721
      %v762 = vpack.c.bf16 %v724, %v723
      %v763 = vpack.c.bf16 %v726, %v725
      %v764 = vpack.c.bf16 %v728, %v727
      %v765 = vpack.c.bf16 %v730, %v729
      %v766 = vpack.c.bf16 %v732, %v731
      %v767 = vpack.c.bf16 %v734, %v733
      %v768 = vpack.c.bf16 %v736, %v735
      %v769 = vld [vmem:[%s3] sm:$0xf]
      %v770 = vld [vmem:[%s3 + $0x4] sm:$0xf]
      %v771 = vld [vmem:[%s3 + $0x8] sm:$0xf]
      %v772 = vld [vmem:[%s3 + $0xc] sm:$0xf]
      %v773 = vld [vmem:[%s3 + $0x10] sm:$0xf]
      %v774 = vld [vmem:[%s3 + $0x14] sm:$0xf]
      %v775 = vld [vmem:[%s3 + $0x18] sm:$0xf]
      %v776 = vld [vmem:[%s3 + $0x1c] sm:$0xf]
      %v777 = vld [vmem:[%s4] sm:$0x1]
      %v779 = vperm.slane %v777, 0
      %v789 = vunpack.c.l.b16 %v769
      %v790 = vunpack.c.l.b16 %v770
      %v791 = vunpack.c.l.b16 %v771
      %v792 = vunpack.c.l.b16 %v772
      %v793 = vunpack.c.l.b16 %v773
      %v794 = vunpack.c.l.b16 %v774
      %v795 = vunpack.c.l.b16 %v775
      %v796 = vunpack.c.l.b16 %v776
      %v797 = vpack.c.b16 %v790, %v789
      %v798 = vpack.c.b16 %v792, %v791
      %v799 = vpack.c.b16 %v794, %v793
      %v800 = vpack.c.b16 %v796, %v795
      %vm805 = vcmask 523264
      %v807 = vsel %vm805, %v737, 0
      %v810 = vsel %vm805, %v738, 0
      %v813 = vsel %vm805, %v739, 0
      %v816 = vsel %vm805, %v740, 0
      %v819 = vsel %vm805, %v741, 0
      %v822 = vsel %vm805, %v742, 0
      %v825 = vsel %vm805, %v743, 0
      %v828 = vsel %vm805, %v744, 0
      %v831 = vsel %vm805, %v745, 0
      %v834 = vsel %vm805, %v746, 0
      %v837 = vsel %vm805, %v747, 0
      %v840 = vsel %vm805, %v748, 0
      %v843 = vsel %vm805, %v749, 0
      %v846 = vsel %vm805, %v750, 0
      %v849 = vsel %vm805, %v751, 0
      %v852 = vsel %vm805, %v752, 0
      %v855 = vsel %vm805, %v753, 0
      %v858 = vsel %vm805, %v754, 0
      %v861 = vsel %vm805, %v755, 0
      %v864 = vsel %vm805, %v756, 0
      %v867 = vsel %vm805, %v757, 0
      %v870 = vsel %vm805, %v758, 0
      %v873 = vsel %vm805, %v759, 0
      %v876 = vsel %vm805, %v760, 0
      %v879 = vsel %vm805, %v761, 0
      %v882 = vsel %vm805, %v762, 0
      %v885 = vsel %vm805, %v763, 0
      %v888 = vsel %vm805, %v764, 0
      %v891 = vsel %vm805, %v765, 0
      %v894 = vsel %vm805, %v766, 0
      %v897 = vsel %vm805, %v767, 0
      %v900 = vsel %vm805, %v768, 0
      %902 = vmatpush.bf16.msra.mxu0 0
      %903 = vmatpush.bf16.msra.mxu0 0
      %904 = vmatpush.bf16.msra.mxu0 0
      %905 = vmatpush.bf16.msra.mxu0 0
      %906 = vmatpush.bf16.msra.mxu0 %v800
      %907 = vmatpush.bf16.msra.mxu0 %v799
      %908 = vmatpush.bf16.msra.mxu0 %v798
      %909 = vmatpush.bf16.msra.mxu0 %v797
      %910 = vmatmul.bf16.gmra.mxu0 %v807
      %v911 = vpop.f32.mrf.mxu0
      %v912 = vadd.f32 %v779, %v911
      %v913 = vpop.f32.mrf.mxu0
      %v914 = vadd.f32 %v779, %v913
      %915 = vmatmul.bf16.gmra.mxu0 %v810
      %v916 = vpop.f32.mrf.mxu0
      %v917 = vadd.f32 %v779, %v916
      %v918 = vpop.f32.mrf.mxu0
      %v919 = vadd.f32 %v779, %v918
      %920 = vmatmul.bf16.gmra.mxu0 %v813
      %v921 = vpop.f32.mrf.mxu0
      %v922 = vadd.f32 %v779, %v921
      %v923 = vpop.f32.mrf.mxu0
      %v924 = vadd.f32 %v779, %v923
      %925 = vmatmul.bf16.gmra.mxu0 %v816
      %v926 = vpop.f32.mrf.mxu0
      %v927 = vadd.f32 %v779, %v926
      %v928 = vpop.f32.mrf.mxu0
      %v929 = vadd.f32 %v779, %v928
      %930 = vmatmul.bf16.gmra.mxu0 %v819
      %v931 = vpop.f32.mrf.mxu0
      %v932 = vadd.f32 %v779, %v931
      %v933 = vpop.f32.mrf.mxu0
      %v934 = vadd.f32 %v779, %v933
      %935 = vmatmul.bf16.gmra.mxu0 %v822
      %v936 = vpop.f32.mrf.mxu0
      %v937 = vadd.f32 %v779, %v936
      %v938 = vpop.f32.mrf.mxu0
      %v939 = vadd.f32 %v779, %v938
      %940 = vmatmul.bf16.gmra.mxu0 %v825
      %v941 = vpop.f32.mrf.mxu0
      %v942 = vadd.f32 %v779, %v941
      %v943 = vpop.f32.mrf.mxu0
      %v944 = vadd.f32 %v779, %v943
      %945 = vmatmul.bf16.gmra.mxu0 %v828
      %v946 = vpop.f32.mrf.mxu0
      %v947 = vadd.f32 %v779, %v946
      %v948 = vpop.f32.mrf.mxu0
      %v949 = vadd.f32 %v779, %v948
      %950 = vmatmul.bf16.gmra.mxu0 %v831
      %v951 = vpop.f32.mrf.mxu0
      %v952 = vadd.f32 %v779, %v951
      %v953 = vpop.f32.mrf.mxu0
      %v954 = vadd.f32 %v779, %v953
      %955 = vmatmul.bf16.gmra.mxu0 %v834
      %v956 = vpop.f32.mrf.mxu0
      %v957 = vadd.f32 %v779, %v956
      %v958 = vpop.f32.mrf.mxu0
      %v959 = vadd.f32 %v779, %v958
      %960 = vmatmul.bf16.gmra.mxu0 %v837
      %v961 = vpop.f32.mrf.mxu0
      %v962 = vadd.f32 %v779, %v961
      %v963 = vpop.f32.mrf.mxu0
      %v964 = vadd.f32 %v779, %v963
      %965 = vmatmul.bf16.gmra.mxu0 %v840
      %v966 = vpop.f32.mrf.mxu0
      %v967 = vadd.f32 %v779, %v966
      %v968 = vpop.f32.mrf.mxu0
      %v969 = vadd.f32 %v779, %v968
      %970 = vmatmul.bf16.gmra.mxu0 %v843
      %v971 = vpop.f32.mrf.mxu0
      %v972 = vadd.f32 %v779, %v971
      %v973 = vpop.f32.mrf.mxu0
      %v974 = vadd.f32 %v779, %v973
      %975 = vmatmul.bf16.gmra.mxu0 %v846
      %v976 = vpop.f32.mrf.mxu0
      %v977 = vadd.f32 %v779, %v976
      %v978 = vpop.f32.mrf.mxu0
      %v979 = vadd.f32 %v779, %v978
      %980 = vmatmul.bf16.gmra.mxu0 %v849
      %v981 = vpop.f32.mrf.mxu0
      %v982 = vadd.f32 %v779, %v981
      %v983 = vpop.f32.mrf.mxu0
      %v984 = vadd.f32 %v779, %v983
      %985 = vmatmul.bf16.gmra.mxu0 %v852
      %v986 = vpop.f32.mrf.mxu0
      %v987 = vadd.f32 %v779, %v986
      %v988 = vpop.f32.mrf.mxu0
      %v989 = vadd.f32 %v779, %v988
      %990 = vmatmul.bf16.gmra.mxu0 %v855
      %v991 = vpop.f32.mrf.mxu0
      %v992 = vadd.f32 %v779, %v991
      %v993 = vpop.f32.mrf.mxu0
      %v994 = vadd.f32 %v779, %v993
      %995 = vmatmul.bf16.gmra.mxu0 %v858
      %v996 = vpop.f32.mrf.mxu0
      %v997 = vadd.f32 %v779, %v996
      %v998 = vpop.f32.mrf.mxu0
      %v999 = vadd.f32 %v779, %v998
      %1000 = vmatmul.bf16.gmra.mxu0 %v861
      %v1001 = vpop.f32.mrf.mxu0
      %v1002 = vadd.f32 %v779, %v1001
      %v1003 = vpop.f32.mrf.mxu0
      %v1004 = vadd.f32 %v779, %v1003
      %1005 = vmatmul.bf16.gmra.mxu0 %v864
      %v1006 = vpop.f32.mrf.mxu0
      %v1007 = vadd.f32 %v779, %v1006
      %v1008 = vpop.f32.mrf.mxu0
      %v1009 = vadd.f32 %v779, %v1008
      %1010 = vmatmul.bf16.gmra.mxu0 %v867
      %v1011 = vpop.f32.mrf.mxu0
      %v1012 = vadd.f32 %v779, %v1011
      %v1013 = vpop.f32.mrf.mxu0
      %v1014 = vadd.f32 %v779, %v1013
      %1015 = vmatmul.bf16.gmra.mxu0 %v870
      %v1016 = vpop.f32.mrf.mxu0
      %v1017 = vadd.f32 %v779, %v1016
      %v1018 = vpop.f32.mrf.mxu0
      %v1019 = vadd.f32 %v779, %v1018
      %1020 = vmatmul.bf16.gmra.mxu0 %v873
      %v1021 = vpop.f32.mrf.mxu0
      %v1022 = vadd.f32 %v779, %v1021
      %v1023 = vpop.f32.mrf.mxu0
      %v1024 = vadd.f32 %v779, %v1023
      %1025 = vmatmul.bf16.gmra.mxu0 %v876
      %v1026 = vpop.f32.mrf.mxu0
      %v1027 = vadd.f32 %v779, %v1026
      %v1028 = vpop.f32.mrf.mxu0
      %v1029 = vadd.f32 %v779, %v1028
      %1030 = vmatmul.bf16.gmra.mxu0 %v879
      %v1031 = vpop.f32.mrf.mxu0
      %v1032 = vadd.f32 %v779, %v1031
      %v1033 = vpop.f32.mrf.mxu0
      %v1034 = vadd.f32 %v779, %v1033
      %1035 = vmatmul.bf16.gmra.mxu0 %v882
      %v1036 = vpop.f32.mrf.mxu0
      %v1037 = vadd.f32 %v779, %v1036
      %v1038 = vpop.f32.mrf.mxu0
      %v1039 = vadd.f32 %v779, %v1038
      %1040 = vmatmul.bf16.gmra.mxu0 %v885
      %v1041 = vpop.f32.mrf.mxu0
      %v1042 = vadd.f32 %v779, %v1041
      %v1043 = vpop.f32.mrf.mxu0
      %v1044 = vadd.f32 %v779, %v1043
      %1045 = vmatmul.bf16.gmra.mxu0 %v888
      %v1046 = vpop.f32.mrf.mxu0
      %v1047 = vadd.f32 %v779, %v1046
      %v1048 = vpop.f32.mrf.mxu0
      %v1049 = vadd.f32 %v779, %v1048
      %1050 = vmatmul.bf16.gmra.mxu0 %v891
      %v1051 = vpop.f32.mrf.mxu0
      %v1052 = vadd.f32 %v779, %v1051
      %v1053 = vpop.f32.mrf.mxu0
      %v1054 = vadd.f32 %v779, %v1053
      %1055 = vmatmul.bf16.gmra.mxu0 %v894
      %v1056 = vpop.f32.mrf.mxu0
      %v1057 = vadd.f32 %v779, %v1056
      %v1058 = vpop.f32.mrf.mxu0
      %v1059 = vadd.f32 %v779, %v1058
      %1060 = vmatmul.bf16.gmra.mxu0 %v897
      %v1061 = vpop.f32.mrf.mxu0
      %v1062 = vadd.f32 %v779, %v1061
      %v1063 = vpop.f32.mrf.mxu0
      %v1064 = vadd.f32 %v779, %v1063
      %1065 = vmatmul.bf16.gmra.mxu0 %v900
      %v1066 = vpop.f32.mrf.mxu0
      %v1067 = vadd.f32 %v779, %v1066
      %v1068 = vpop.f32.mrf.mxu0
      %v1069 = vadd.f32 %v779, %v1068
      %1070 = vdwg.mxu0
      %v1071 = vmax.f32 %v912, 0.0
      %v1072 = vmax.f32 %v914, 0.0
      %v1073 = vmax.f32 %v917, 0.0
      %v1074 = vmax.f32 %v919, 0.0
      %v1075 = vmax.f32 %v922, 0.0
      %v1076 = vmax.f32 %v924, 0.0
      %v1077 = vmax.f32 %v927, 0.0
      %v1078 = vmax.f32 %v929, 0.0
      %v1079 = vmax.f32 %v932, 0.0
      %v1080 = vmax.f32 %v934, 0.0
      %v1081 = vmax.f32 %v937, 0.0
      %v1082 = vmax.f32 %v939, 0.0
      %v1083 = vmax.f32 %v942, 0.0
      %v1084 = vmax.f32 %v944, 0.0
      %v1085 = vmax.f32 %v947, 0.0
      %v1086 = vmax.f32 %v949, 0.0
      %v1087 = vmax.f32 %v952, 0.0
      %v1088 = vmax.f32 %v954, 0.0
      %v1089 = vmax.f32 %v957, 0.0
      %v1090 = vmax.f32 %v959, 0.0
      %v1091 = vmax.f32 %v962, 0.0
      %v1092 = vmax.f32 %v964, 0.0
      %v1093 = vmax.f32 %v967, 0.0
      %v1094 = vmax.f32 %v969, 0.0
      %v1095 = vmax.f32 %v972, 0.0
      %v1096 = vmax.f32 %v974, 0.0
      %v1097 = vmax.f32 %v977, 0.0
      %v1098 = vmax.f32 %v979, 0.0
      %v1099 = vmax.f32 %v982, 0.0
      %v1100 = vmax.f32 %v984, 0.0
      %v1101 = vmax.f32 %v987, 0.0
      %v1102 = vmax.f32 %v989, 0.0
      %v1103 = vmax.f32 %v992, 0.0
      %v1104 = vmax.f32 %v994, 0.0
      %v1105 = vmax.f32 %v997, 0.0
      %v1106 = vmax.f32 %v999, 0.0
      %v1107 = vmax.f32 %v1002, 0.0
      %v1108 = vmax.f32 %v1004, 0.0
      %v1109 = vmax.f32 %v1007, 0.0
      %v1110 = vmax.f32 %v1009, 0.0
      %v1111 = vmax.f32 %v1012, 0.0
      %v1112 = vmax.f32 %v1014, 0.0
      %v1113 = vmax.f32 %v1017, 0.0
      %v1114 = vmax.f32 %v1019, 0.0
      %v1115 = vmax.f32 %v1022, 0.0
      %v1116 = vmax.f32 %v1024, 0.0
      %v1117 = vmax.f32 %v1027, 0.0
      %v1118 = vmax.f32 %v1029, 0.0
      %v1119 = vmax.f32 %v1032, 0.0
      %v1120 = vmax.f32 %v1034, 0.0
      %v1121 = vmax.f32 %v1037, 0.0
      %v1122 = vmax.f32 %v1039, 0.0
      %v1123 = vmax.f32 %v1042, 0.0
      %v1124 = vmax.f32 %v1044, 0.0
      %v1125 = vmax.f32 %v1047, 0.0
      %v1126 = vmax.f32 %v1049, 0.0
      %v1127 = vmax.f32 %v1052, 0.0
      %v1128 = vmax.f32 %v1054, 0.0
      %v1129 = vmax.f32 %v1057, 0.0
      %v1130 = vmax.f32 %v1059, 0.0
      %v1131 = vmax.f32 %v1062, 0.0
      %v1132 = vmax.f32 %v1064, 0.0
      %v1133 = vmax.f32 %v1067, 0.0
      %v1134 = vmax.f32 %v1069, 0.0
      %v1135 = vld [vmem:[%s5] sm:$0x1]
      %v1137 = vperm.slane %v1135, 0
      %v1139 = vmul.f32 %v1071, %v1137
      %v1140 = vmul.f32 %v1072, %v1137
      %v1141 = vmul.f32 %v1073, %v1137
      %v1142 = vmul.f32 %v1074, %v1137
      %v1143 = vmul.f32 %v1075, %v1137
      %v1144 = vmul.f32 %v1076, %v1137
      %v1145 = vmul.f32 %v1077, %v1137
      %v1146 = vmul.f32 %v1078, %v1137
      %v1147 = vmul.f32 %v1079, %v1137
      %v1148 = vmul.f32 %v1080, %v1137
      %v1149 = vmul.f32 %v1081, %v1137
      %v1150 = vmul.f32 %v1082, %v1137
      %v1151 = vmul.f32 %v1083, %v1137
      %v1152 = vmul.f32 %v1084, %v1137
      %v1153 = vmul.f32 %v1085, %v1137
      %v1154 = vmul.f32 %v1086, %v1137
      %v1155 = vmul.f32 %v1087, %v1137
      %v1156 = vmul.f32 %v1088, %v1137
      %v1157 = vmul.f32 %v1089, %v1137
      %v1158 = vmul.f32 %v1090, %v1137
      %v1159 = vmul.f32 %v1091, %v1137
      %v1160 = vmul.f32 %v1092, %v1137
      %v1161 = vmul.f32 %v1093, %v1137
      %v1162 = vmul.f32 %v1094, %v1137
      %v1163 = vmul.f32 %v1095, %v1137
      %v1164 = vmul.f32 %v1096, %v1137
      %v1165 = vmul.f32 %v1097, %v1137
      %v1166 = vmul.f32 %v1098, %v1137
      %v1167 = vmul.f32 %v1099, %v1137
      %v1168 = vmul.f32 %v1100, %v1137
      %v1169 = vmul.f32 %v1101, %v1137
      %v1170 = vmul.f32 %v1102, %v1137
      %v1171 = vmul.f32 %v1103, %v1137
      %v1172 = vmul.f32 %v1104, %v1137
      %v1173 = vmul.f32 %v1105, %v1137
      %v1174 = vmul.f32 %v1106, %v1137
      %v1175 = vmul.f32 %v1107, %v1137
      %v1176 = vmul.f32 %v1108, %v1137
      %v1177 = vmul.f32 %v1109, %v1137
      %v1178 = vmul.f32 %v1110, %v1137
      %v1179 = vmul.f32 %v1111, %v1137
      %v1180 = vmul.f32 %v1112, %v1137
      %v1181 = vmul.f32 %v1113, %v1137
      %v1182 = vmul.f32 %v1114, %v1137
      %v1183 = vmul.f32 %v1115, %v1137
      %v1184 = vmul.f32 %v1116, %v1137
      %v1185 = vmul.f32 %v1117, %v1137
      %v1186 = vmul.f32 %v1118, %v1137
      %v1187 = vmul.f32 %v1119, %v1137
      %v1188 = vmul.f32 %v1120, %v1137
      %v1189 = vmul.f32 %v1121, %v1137
      %v1190 = vmul.f32 %v1122, %v1137
      %v1191 = vmul.f32 %v1123, %v1137
      %v1192 = vmul.f32 %v1124, %v1137
      %v1193 = vmul.f32 %v1125, %v1137
      %v1194 = vmul.f32 %v1126, %v1137
      %v1195 = vmul.f32 %v1127, %v1137
      %v1196 = vmul.f32 %v1128, %v1137
      %v1197 = vmul.f32 %v1129, %v1137
      %v1198 = vmul.f32 %v1130, %v1137
      %v1199 = vmul.f32 %v1131, %v1137
      %v1200 = vmul.f32 %v1132, %v1137
      %v1201 = vmul.f32 %v1133, %v1137
      %v1202 = vmul.f32 %v1134, %v1137
      %vm1203 = vcmask 261120
      %v1204 = vsel %vm1203, %v1139, 0.0
      %1205 = vadd.xlane.f32.xlu0 %v1204
      %v1206 = vpop.xlane.xlu0 %1205
      %v1207 = vsel %vm1203, %v1140, 0.0
      %1208 = vadd.xlane.f32.xlu0 %v1207
      %v1209 = vpop.xlane.xlu0 %1208
      %v1210 = vsel %vm1203, %v1141, 0.0
      %1211 = vadd.xlane.f32.xlu0 %v1210
      %v1212 = vpop.xlane.xlu0 %1211
      %v1213 = vsel %vm1203, %v1142, 0.0
      %1214 = vadd.xlane.f32.xlu0 %v1213
      %v1215 = vpop.xlane.xlu0 %1214
      %v1216 = vsel %vm1203, %v1143, 0.0
      %1217 = vadd.xlane.f32.xlu0 %v1216
      %v1218 = vpop.xlane.xlu0 %1217
      %v1219 = vsel %vm1203, %v1144, 0.0
      %1220 = vadd.xlane.f32.xlu0 %v1219
      %v1221 = vpop.xlane.xlu0 %1220
      %v1222 = vsel %vm1203, %v1145, 0.0
      %1223 = vadd.xlane.f32.xlu0 %v1222
      %v1224 = vpop.xlane.xlu0 %1223
      %v1225 = vsel %vm1203, %v1146, 0.0
      %1226 = vadd.xlane.f32.xlu0 %v1225
      %v1227 = vpop.xlane.xlu0 %1226
      %v1228 = vsel %vm1203, %v1147, 0.0
      %1229 = vadd.xlane.f32.xlu0 %v1228
      %v1230 = vpop.xlane.xlu0 %1229
      %v1231 = vsel %vm1203, %v1148, 0.0
      %1232 = vadd.xlane.f32.xlu0 %v1231
      %v1233 = vpop.xlane.xlu0 %1232
      %v1234 = vsel %vm1203, %v1149, 0.0
      %1235 = vadd.xlane.f32.xlu0 %v1234
      %v1236 = vpop.xlane.xlu0 %1235
      %v1237 = vsel %vm1203, %v1150, 0.0
      %1238 = vadd.xlane.f32.xlu0 %v1237
      %v1239 = vpop.xlane.xlu0 %1238
      %v1240 = vsel %vm1203, %v1151, 0.0
      %1241 = vadd.xlane.f32.xlu0 %v1240
      %v1242 = vpop.xlane.xlu0 %1241
      %v1243 = vsel %vm1203, %v1152, 0.0
      %1244 = vadd.xlane.f32.xlu0 %v1243
      %v1245 = vpop.xlane.xlu0 %1244
      %v1246 = vsel %vm1203, %v1153, 0.0
      %1247 = vadd.xlane.f32.xlu0 %v1246
      %v1248 = vpop.xlane.xlu0 %1247
      %v1249 = vsel %vm1203, %v1154, 0.0
      %1250 = vadd.xlane.f32.xlu0 %v1249
      %v1251 = vpop.xlane.xlu0 %1250
      %v1252 = vsel %vm1203, %v1155, 0.0
      %1253 = vadd.xlane.f32.xlu0 %v1252
      %v1254 = vpop.xlane.xlu0 %1253
      %v1255 = vsel %vm1203, %v1156, 0.0
      %1256 = vadd.xlane.f32.xlu0 %v1255
      %v1257 = vpop.xlane.xlu0 %1256
      %v1258 = vsel %vm1203, %v1157, 0.0
      %1259 = vadd.xlane.f32.xlu0 %v1258
      %v1260 = vpop.xlane.xlu0 %1259
      %v1261 = vsel %vm1203, %v1158, 0.0
      %1262 = vadd.xlane.f32.xlu0 %v1261
      %v1263 = vpop.xlane.xlu0 %1262
      %v1264 = vsel %vm1203, %v1159, 0.0
      %1265 = vadd.xlane.f32.xlu0 %v1264
      %v1266 = vpop.xlane.xlu0 %1265
      %v1267 = vsel %vm1203, %v1160, 0.0
      %1268 = vadd.xlane.f32.xlu0 %v1267
      %v1269 = vpop.xlane.xlu0 %1268
      %v1270 = vsel %vm1203, %v1161, 0.0
      %1271 = vadd.xlane.f32.xlu0 %v1270
      %v1272 = vpop.xlane.xlu0 %1271
      %v1273 = vsel %vm1203, %v1162, 0.0
      %1274 = vadd.xlane.f32.xlu0 %v1273
      %v1275 = vpop.xlane.xlu0 %1274
      %v1276 = vsel %vm1203, %v1163, 0.0
      %1277 = vadd.xlane.f32.xlu0 %v1276
      %v1278 = vpop.xlane.xlu0 %1277
      %v1279 = vsel %vm1203, %v1164, 0.0
      %1280 = vadd.xlane.f32.xlu0 %v1279
      %v1281 = vpop.xlane.xlu0 %1280
      %v1282 = vsel %vm1203, %v1165, 0.0
      %1283 = vadd.xlane.f32.xlu0 %v1282
      %v1284 = vpop.xlane.xlu0 %1283
      %v1285 = vsel %vm1203, %v1166, 0.0
      %1286 = vadd.xlane.f32.xlu0 %v1285
      %v1287 = vpop.xlane.xlu0 %1286
      %v1288 = vsel %vm1203, %v1167, 0.0
      %1289 = vadd.xlane.f32.xlu0 %v1288
      %v1290 = vpop.xlane.xlu0 %1289
      %v1291 = vsel %vm1203, %v1168, 0.0
      %1292 = vadd.xlane.f32.xlu0 %v1291
      %v1293 = vpop.xlane.xlu0 %1292
      %v1294 = vsel %vm1203, %v1169, 0.0
      %1295 = vadd.xlane.f32.xlu0 %v1294
      %v1296 = vpop.xlane.xlu0 %1295
      %v1297 = vsel %vm1203, %v1170, 0.0
      %1298 = vadd.xlane.f32.xlu0 %v1297
      %v1299 = vpop.xlane.xlu0 %1298
      %v1300 = vsel %vm1203, %v1171, 0.0
      %1301 = vadd.xlane.f32.xlu0 %v1300
      %v1302 = vpop.xlane.xlu0 %1301
      %v1303 = vsel %vm1203, %v1172, 0.0
      %1304 = vadd.xlane.f32.xlu0 %v1303
      %v1305 = vpop.xlane.xlu0 %1304
      %v1306 = vsel %vm1203, %v1173, 0.0
      %1307 = vadd.xlane.f32.xlu0 %v1306
      %v1308 = vpop.xlane.xlu0 %1307
      %v1309 = vsel %vm1203, %v1174, 0.0
      %1310 = vadd.xlane.f32.xlu0 %v1309
      %v1311 = vpop.xlane.xlu0 %1310
      %v1312 = vsel %vm1203, %v1175, 0.0
      %1313 = vadd.xlane.f32.xlu0 %v1312
      %v1314 = vpop.xlane.xlu0 %1313
      %v1315 = vsel %vm1203, %v1176, 0.0
      %1316 = vadd.xlane.f32.xlu0 %v1315
      %v1317 = vpop.xlane.xlu0 %1316
      %v1318 = vsel %vm1203, %v1177, 0.0
      %1319 = vadd.xlane.f32.xlu0 %v1318
      %v1320 = vpop.xlane.xlu0 %1319
      %v1321 = vsel %vm1203, %v1178, 0.0
      %1322 = vadd.xlane.f32.xlu0 %v1321
      %v1323 = vpop.xlane.xlu0 %1322
      %v1324 = vsel %vm1203, %v1179, 0.0
      %1325 = vadd.xlane.f32.xlu0 %v1324
      %v1326 = vpop.xlane.xlu0 %1325
      %v1327 = vsel %vm1203, %v1180, 0.0
      %1328 = vadd.xlane.f32.xlu0 %v1327
      %v1329 = vpop.xlane.xlu0 %1328
      %v1330 = vsel %vm1203, %v1181, 0.0
      %1331 = vadd.xlane.f32.xlu0 %v1330
      %v1332 = vpop.xlane.xlu0 %1331
      %v1333 = vsel %vm1203, %v1182, 0.0
      %1334 = vadd.xlane.f32.xlu0 %v1333
      %v1335 = vpop.xlane.xlu0 %1334
      %v1336 = vsel %vm1203, %v1183, 0.0
      %1337 = vadd.xlane.f32.xlu0 %v1336
      %v1338 = vpop.xlane.xlu0 %1337
      %v1339 = vsel %vm1203, %v1184, 0.0
      %1340 = vadd.xlane.f32.xlu0 %v1339
      %v1341 = vpop.xlane.xlu0 %1340
      %v1342 = vsel %vm1203, %v1185, 0.0
      %1343 = vadd.xlane.f32.xlu0 %v1342
      %v1344 = vpop.xlane.xlu0 %1343
      %v1345 = vsel %vm1203, %v1186, 0.0
      %1346 = vadd.xlane.f32.xlu0 %v1345
      %v1347 = vpop.xlane.xlu0 %1346
      %v1348 = vsel %vm1203, %v1187, 0.0
      %1349 = vadd.xlane.f32.xlu0 %v1348
      %v1350 = vpop.xlane.xlu0 %1349
      %v1351 = vsel %vm1203, %v1188, 0.0
      %1352 = vadd.xlane.f32.xlu0 %v1351
      %v1353 = vpop.xlane.xlu0 %1352
      %v1354 = vsel %vm1203, %v1189, 0.0
      %1355 = vadd.xlane.f32.xlu0 %v1354
      %v1356 = vpop.xlane.xlu0 %1355
      %v1357 = vsel %vm1203, %v1190, 0.0
      %1358 = vadd.xlane.f32.xlu0 %v1357
      %v1359 = vpop.xlane.xlu0 %1358
      %v1360 = vsel %vm1203, %v1191, 0.0
      %1361 = vadd.xlane.f32.xlu0 %v1360
      %v1362 = vpop.xlane.xlu0 %1361
      %v1363 = vsel %vm1203, %v1192, 0.0
      %1364 = vadd.xlane.f32.xlu0 %v1363
      %v1365 = vpop.xlane.xlu0 %1364
      %v1366 = vsel %vm1203, %v1193, 0.0
      %1367 = vadd.xlane.f32.xlu0 %v1366
      %v1368 = vpop.xlane.xlu0 %1367
      %v1369 = vsel %vm1203, %v1194, 0.0
      %1370 = vadd.xlane.f32.xlu0 %v1369
      %v1371 = vpop.xlane.xlu0 %1370
      %v1372 = vsel %vm1203, %v1195, 0.0
      %1373 = vadd.xlane.f32.xlu0 %v1372
      %v1374 = vpop.xlane.xlu0 %1373
      %v1375 = vsel %vm1203, %v1196, 0.0
      %1376 = vadd.xlane.f32.xlu0 %v1375
      %v1377 = vpop.xlane.xlu0 %1376
      %v1378 = vsel %vm1203, %v1197, 0.0
      %1379 = vadd.xlane.f32.xlu0 %v1378
      %v1380 = vpop.xlane.xlu0 %1379
      %v1381 = vsel %vm1203, %v1198, 0.0
      %1382 = vadd.xlane.f32.xlu0 %v1381
      %v1383 = vpop.xlane.xlu0 %1382
      %v1384 = vsel %vm1203, %v1199, 0.0
      %1385 = vadd.xlane.f32.xlu0 %v1384
      %v1386 = vpop.xlane.xlu0 %1385
      %v1387 = vsel %vm1203, %v1200, 0.0
      %1388 = vadd.xlane.f32.xlu0 %v1387
      %v1389 = vpop.xlane.xlu0 %1388
      %v1390 = vsel %vm1203, %v1201, 0.0
      %1391 = vadd.xlane.f32.xlu0 %v1390
      %v1392 = vpop.xlane.xlu0 %1391
      %v1393 = vsel %vm1203, %v1202, 0.0
      %1394 = vadd.xlane.f32.xlu0 %v1393
      %v1395 = vpop.xlane.xlu0 %1394
      %v1396 = vld [vmem:[#allocation2] sm:$0x1]
      %v1398 = vperm.slane %v1396, 0
      %v1400 = vadd.f32 %v1206, %v1398
      %v1401 = vadd.f32 %v1209, %v1398
      %v1402 = vadd.f32 %v1212, %v1398
      %v1403 = vadd.f32 %v1215, %v1398
      %v1404 = vadd.f32 %v1218, %v1398
      %v1405 = vadd.f32 %v1221, %v1398
      %v1406 = vadd.f32 %v1224, %v1398
      %v1407 = vadd.f32 %v1227, %v1398
      %v1408 = vadd.f32 %v1230, %v1398
      %v1409 = vadd.f32 %v1233, %v1398
      %v1410 = vadd.f32 %v1236, %v1398
      %v1411 = vadd.f32 %v1239, %v1398
      %v1412 = vadd.f32 %v1242, %v1398
      %v1413 = vadd.f32 %v1245, %v1398
      %v1414 = vadd.f32 %v1248, %v1398
      %v1415 = vadd.f32 %v1251, %v1398
      %v1416 = vadd.f32 %v1254, %v1398
      %v1417 = vadd.f32 %v1257, %v1398
      %v1418 = vadd.f32 %v1260, %v1398
      %v1419 = vadd.f32 %v1263, %v1398
      %v1420 = vadd.f32 %v1266, %v1398
      %v1421 = vadd.f32 %v1269, %v1398
      %v1422 = vadd.f32 %v1272, %v1398
      %v1423 = vadd.f32 %v1275, %v1398
      %v1424 = vadd.f32 %v1278, %v1398
      %v1425 = vadd.f32 %v1281, %v1398
      %v1426 = vadd.f32 %v1284, %v1398
      %v1427 = vadd.f32 %v1287, %v1398
      %v1428 = vadd.f32 %v1290, %v1398
      %v1429 = vadd.f32 %v1293, %v1398
      %v1430 = vadd.f32 %v1296, %v1398
      %v1431 = vadd.f32 %v1299, %v1398
      %v1432 = vadd.f32 %v1302, %v1398
      %v1433 = vadd.f32 %v1305, %v1398
      %v1434 = vadd.f32 %v1308, %v1398
      %v1435 = vadd.f32 %v1311, %v1398
      %v1436 = vadd.f32 %v1314, %v1398
      %v1437 = vadd.f32 %v1317, %v1398
      %v1438 = vadd.f32 %v1320, %v1398
      %v1439 = vadd.f32 %v1323, %v1398
      %v1440 = vadd.f32 %v1326, %v1398
      %v1441 = vadd.f32 %v1329, %v1398
      %v1442 = vadd.f32 %v1332, %v1398
      %v1443 = vadd.f32 %v1335, %v1398
      %v1444 = vadd.f32 %v1338, %v1398
      %v1445 = vadd.f32 %v1341, %v1398
      %v1446 = vadd.f32 %v1344, %v1398
      %v1447 = vadd.f32 %v1347, %v1398
      %v1448 = vadd.f32 %v1350, %v1398
      %v1449 = vadd.f32 %v1353, %v1398
      %v1450 = vadd.f32 %v1356, %v1398
      %v1451 = vadd.f32 %v1359, %v1398
      %v1452 = vadd.f32 %v1362, %v1398
      %v1453 = vadd.f32 %v1365, %v1398
      %v1454 = vadd.f32 %v1368, %v1398
      %v1455 = vadd.f32 %v1371, %v1398
      %v1456 = vadd.f32 %v1374, %v1398
      %v1457 = vadd.f32 %v1377, %v1398
      %v1458 = vadd.f32 %v1380, %v1398
      %v1459 = vadd.f32 %v1383, %v1398
      %v1460 = vadd.f32 %v1386, %v1398
      %v1461 = vadd.f32 %v1389, %v1398
      %v1462 = vadd.f32 %v1392, %v1398
      %v1463 = vadd.f32 %v1395, %v1398
      %v1464 = vxor.u32 %v1400, 2147483648
      %v1465 = vxor.u32 %v1401, 2147483648
      %v1466 = vxor.u32 %v1402, 2147483648
      %v1467 = vxor.u32 %v1403, 2147483648
      %v1468 = vxor.u32 %v1404, 2147483648
      %v1469 = vxor.u32 %v1405, 2147483648
      %v1470 = vxor.u32 %v1406, 2147483648
      %v1471 = vxor.u32 %v1407, 2147483648
      %v1472 = vxor.u32 %v1408, 2147483648
      %v1473 = vxor.u32 %v1409, 2147483648
      %v1474 = vxor.u32 %v1410, 2147483648
      %v1475 = vxor.u32 %v1411, 2147483648
      %v1476 = vxor.u32 %v1412, 2147483648
      %v1477 = vxor.u32 %v1413, 2147483648
      %v1478 = vxor.u32 %v1414, 2147483648
      %v1479 = vxor.u32 %v1415, 2147483648
      %v1480 = vxor.u32 %v1416, 2147483648
      %v1481 = vxor.u32 %v1417, 2147483648
      %v1482 = vxor.u32 %v1418, 2147483648
      %v1483 = vxor.u32 %v1419, 2147483648
      %v1484 = vxor.u32 %v1420, 2147483648
      %v1485 = vxor.u32 %v1421, 2147483648
      %v1486 = vxor.u32 %v1422, 2147483648
      %v1487 = vxor.u32 %v1423, 2147483648
      %v1488 = vxor.u32 %v1424, 2147483648
      %v1489 = vxor.u32 %v1425, 2147483648
      %v1490 = vxor.u32 %v1426, 2147483648
      %v1491 = vxor.u32 %v1427, 2147483648
      %v1492 = vxor.u32 %v1428, 2147483648
      %v1493 = vxor.u32 %v1429, 2147483648
      %v1494 = vxor.u32 %v1430, 2147483648
      %v1495 = vxor.u32 %v1431, 2147483648
      %v1496 = vxor.u32 %v1432, 2147483648
      %v1497 = vxor.u32 %v1433, 2147483648
      %v1498 = vxor.u32 %v1434, 2147483648
      %v1499 = vxor.u32 %v1435, 2147483648
      %v1500 = vxor.u32 %v1436, 2147483648
      %v1501 = vxor.u32 %v1437, 2147483648
      %v1502 = vxor.u32 %v1438, 2147483648
      %v1503 = vxor.u32 %v1439, 2147483648
      %v1504 = vxor.u32 %v1440, 2147483648
      %v1505 = vxor.u32 %v1441, 2147483648
      %v1506 = vxor.u32 %v1442, 2147483648
      %v1507 = vxor.u32 %v1443, 2147483648
      %v1508 = vxor.u32 %v1444, 2147483648
      %v1509 = vxor.u32 %v1445, 2147483648
      %v1510 = vxor.u32 %v1446, 2147483648
      %v1511 = vxor.u32 %v1447, 2147483648
      %v1512 = vxor.u32 %v1448, 2147483648
      %v1513 = vxor.u32 %v1449, 2147483648
      %v1514 = vxor.u32 %v1450, 2147483648
      %v1515 = vxor.u32 %v1451, 2147483648
      %v1516 = vxor.u32 %v1452, 2147483648
      %v1517 = vxor.u32 %v1453, 2147483648
      %v1518 = vxor.u32 %v1454, 2147483648
      %v1519 = vxor.u32 %v1455, 2147483648
      %v1520 = vxor.u32 %v1456, 2147483648
      %v1521 = vxor.u32 %v1457, 2147483648
      %v1522 = vxor.u32 %v1458, 2147483648
      %v1523 = vxor.u32 %v1459, 2147483648
      %v1524 = vxor.u32 %v1460, 2147483648
      %v1525 = vxor.u32 %v1461, 2147483648
      %v1526 = vxor.u32 %v1462, 2147483648
      %v1527 = vxor.u32 %v1463, 2147483648
      %v1528 = vmul.f32 %v1464, 1.442695
      %v1529 = vpow.pop %v1528
      %v1530 = vmul.f32 %v1465, 1.442695
      %v1531 = vpow.pop %v1530
      %v1532 = vmul.f32 %v1466, 1.442695
      %v1533 = vpow.pop %v1532
      %v1534 = vmul.f32 %v1467, 1.442695
      %v1535 = vpow.pop %v1534
      %v1536 = vmul.f32 %v1468, 1.442695
      %v1537 = vpow.pop %v1536
      %v1538 = vmul.f32 %v1469, 1.442695
      %v1539 = vpow.pop %v1538
      %v1540 = vmul.f32 %v1470, 1.442695
      %v1541 = vpow.pop %v1540
      %v1542 = vmul.f32 %v1471, 1.442695
      %v1543 = vpow.pop %v1542
      %v1544 = vmul.f32 %v1472, 1.442695
      %v1545 = vpow.pop %v1544
      %v1546 = vmul.f32 %v1473, 1.442695
      %v1547 = vpow.pop %v1546
      %v1548 = vmul.f32 %v1474, 1.442695
      %v1549 = vpow.pop %v1548
      %v1550 = vmul.f32 %v1475, 1.442695
      %v1551 = vpow.pop %v1550
      %v1552 = vmul.f32 %v1476, 1.442695
      %v1553 = vpow.pop %v1552
      %v1554 = vmul.f32 %v1477, 1.442695
      %v1555 = vpow.pop %v1554
      %v1556 = vmul.f32 %v1478, 1.442695
      %v1557 = vpow.pop %v1556
      %v1558 = vmul.f32 %v1479, 1.442695
      %v1559 = vpow.pop %v1558
      %v1560 = vmul.f32 %v1480, 1.442695
      %v1561 = vpow.pop %v1560
      %v1562 = vmul.f32 %v1481, 1.442695
      %v1563 = vpow.pop %v1562
      %v1564 = vmul.f32 %v1482, 1.442695
      %v1565 = vpow.pop %v1564
      %v1566 = vmul.f32 %v1483, 1.442695
      %v1567 = vpow.pop %v1566
      %v1568 = vmul.f32 %v1484, 1.442695
      %v1569 = vpow.pop %v1568
      %v1570 = vmul.f32 %v1485, 1.442695
      %v1571 = vpow.pop %v1570
      %v1572 = vmul.f32 %v1486, 1.442695
      %v1573 = vpow.pop %v1572
      %v1574 = vmul.f32 %v1487, 1.442695
      %v1575 = vpow.pop %v1574
      %v1576 = vmul.f32 %v1488, 1.442695
      %v1577 = vpow.pop %v1576
      %v1578 = vmul.f32 %v1489, 1.442695
      %v1579 = vpow.pop %v1578
      %v1580 = vmul.f32 %v1490, 1.442695
      %v1581 = vpow.pop %v1580
      %v1582 = vmul.f32 %v1491, 1.442695
      %v1583 = vpow.pop %v1582
      %v1584 = vmul.f32 %v1492, 1.442695
      %v1585 = vpow.pop %v1584
      %v1586 = vmul.f32 %v1493, 1.442695
      %v1587 = vpow.pop %v1586
      %v1588 = vmul.f32 %v1494, 1.442695
      %v1589 = vpow.pop %v1588
      %v1590 = vmul.f32 %v1495, 1.442695
      %v1591 = vpow.pop %v1590
      %v1592 = vmul.f32 %v1496, 1.442695
      %v1593 = vpow.pop %v1592
      %v1594 = vmul.f32 %v1497, 1.442695
      %v1595 = vpow.pop %v1594
      %v1596 = vmul.f32 %v1498, 1.442695
      %v1597 = vpow.pop %v1596
      %v1598 = vmul.f32 %v1499, 1.442695
      %v1599 = vpow.pop %v1598
      %v1600 = vmul.f32 %v1500, 1.442695
      %v1601 = vpow.pop %v1600
      %v1602 = vmul.f32 %v1501, 1.442695
      %v1603 = vpow.pop %v1602
      %v1604 = vmul.f32 %v1502, 1.442695
      %v1605 = vpow.pop %v1604
      %v1606 = vmul.f32 %v1503, 1.442695
      %v1607 = vpow.pop %v1606
      %v1608 = vmul.f32 %v1504, 1.442695
      %v1609 = vpow.pop %v1608
      %v1610 = vmul.f32 %v1505, 1.442695
      %v1611 = vpow.pop %v1610
      %v1612 = vmul.f32 %v1506, 1.442695
      %v1613 = vpow.pop %v1612
      %v1614 = vmul.f32 %v1507, 1.442695
      %v1615 = vpow.pop %v1614
      %v1616 = vmul.f32 %v1508, 1.442695
      %v1617 = vpow.pop %v1616
      %v1618 = vmul.f32 %v1509, 1.442695
      %v1619 = vpow.pop %v1618
      %v1620 = vmul.f32 %v1510, 1.442695
      %v1621 = vpow.pop %v1620
      %v1622 = vmul.f32 %v1511, 1.442695
      %v1623 = vpow.pop %v1622
      %v1624 = vmul.f32 %v1512, 1.442695
      %v1625 = vpow.pop %v1624
      %v1626 = vmul.f32 %v1513, 1.442695
      %v1627 = vpow.pop %v1626
      %v1628 = vmul.f32 %v1514, 1.442695
      %v1629 = vpow.pop %v1628
      %v1630 = vmul.f32 %v1515, 1.442695
      %v1631 = vpow.pop %v1630
      %v1632 = vmul.f32 %v1516, 1.442695
      %v1633 = vpow.pop %v1632
      %v1634 = vmul.f32 %v1517, 1.442695
      %v1635 = vpow.pop %v1634
      %v1636 = vmul.f32 %v1518, 1.442695
      %v1637 = vpow.pop %v1636
      %v1638 = vmul.f32 %v1519, 1.442695
      %v1639 = vpow.pop %v1638
      %v1640 = vmul.f32 %v1520, 1.442695
      %v1641 = vpow.pop %v1640
      %v1642 = vmul.f32 %v1521, 1.442695
      %v1643 = vpow.pop %v1642
      %v1644 = vmul.f32 %v1522, 1.442695
      %v1645 = vpow.pop %v1644
      %v1646 = vmul.f32 %v1523, 1.442695
      %v1647 = vpow.pop %v1646
      %v1648 = vmul.f32 %v1524, 1.442695
      %v1649 = vpow.pop %v1648
      %v1650 = vmul.f32 %v1525, 1.442695
      %v1651 = vpow.pop %v1650
      %v1652 = vmul.f32 %v1526, 1.442695
      %v1653 = vpow.pop %v1652
      %v1654 = vmul.f32 %v1527, 1.442695
      %v1655 = vpow.pop %v1654
      %v1656 = vadd.f32 %v1529, 1.0
      %v1657 = vadd.f32 %v1531, 1.0
      %v1658 = vadd.f32 %v1533, 1.0
      %v1659 = vadd.f32 %v1535, 1.0
      %v1660 = vadd.f32 %v1537, 1.0
      %v1661 = vadd.f32 %v1539, 1.0
      %v1662 = vadd.f32 %v1541, 1.0
      %v1663 = vadd.f32 %v1543, 1.0
      %v1664 = vadd.f32 %v1545, 1.0
      %v1665 = vadd.f32 %v1547, 1.0
      %v1666 = vadd.f32 %v1549, 1.0
      %v1667 = vadd.f32 %v1551, 1.0
      %v1668 = vadd.f32 %v1553, 1.0
      %v1669 = vadd.f32 %v1555, 1.0
      %v1670 = vadd.f32 %v1557, 1.0
      %v1671 = vadd.f32 %v1559, 1.0
      %v1672 = vadd.f32 %v1561, 1.0
      %v1673 = vadd.f32 %v1563, 1.0
      %v1674 = vadd.f32 %v1565, 1.0
      %v1675 = vadd.f32 %v1567, 1.0
      %v1676 = vadd.f32 %v1569, 1.0
      %v1677 = vadd.f32 %v1571, 1.0
      %v1678 = vadd.f32 %v1573, 1.0
      %v1679 = vadd.f32 %v1575, 1.0
      %v1680 = vadd.f32 %v1577, 1.0
      %v1681 = vadd.f32 %v1579, 1.0
      %v1682 = vadd.f32 %v1581, 1.0
      %v1683 = vadd.f32 %v1583, 1.0
      %v1684 = vadd.f32 %v1585, 1.0
      %v1685 = vadd.f32 %v1587, 1.0
      %v1686 = vadd.f32 %v1589, 1.0
      %v1687 = vadd.f32 %v1591, 1.0
      %v1688 = vadd.f32 %v1593, 1.0
      %v1689 = vadd.f32 %v1595, 1.0
      %v1690 = vadd.f32 %v1597, 1.0
      %v1691 = vadd.f32 %v1599, 1.0
      %v1692 = vadd.f32 %v1601, 1.0
      %v1693 = vadd.f32 %v1603, 1.0
      %v1694 = vadd.f32 %v1605, 1.0
      %v1695 = vadd.f32 %v1607, 1.0
      %v1696 = vadd.f32 %v1609, 1.0
      %v1697 = vadd.f32 %v1611, 1.0
      %v1698 = vadd.f32 %v1613, 1.0
      %v1699 = vadd.f32 %v1615, 1.0
      %v1700 = vadd.f32 %v1617, 1.0
      %v1701 = vadd.f32 %v1619, 1.0
      %v1702 = vadd.f32 %v1621, 1.0
      %v1703 = vadd.f32 %v1623, 1.0
      %v1704 = vadd.f32 %v1625, 1.0
      %v1705 = vadd.f32 %v1627, 1.0
      %v1706 = vadd.f32 %v1629, 1.0
      %v1707 = vadd.f32 %v1631, 1.0
      %v1708 = vadd.f32 %v1633, 1.0
      %v1709 = vadd.f32 %v1635, 1.0
      %v1710 = vadd.f32 %v1637, 1.0
      %v1711 = vadd.f32 %v1639, 1.0
      %v1712 = vadd.f32 %v1641, 1.0
      %v1713 = vadd.f32 %v1643, 1.0
      %v1714 = vadd.f32 %v1645, 1.0
      %v1715 = vadd.f32 %v1647, 1.0
      %v1716 = vadd.f32 %v1649, 1.0
      %v1717 = vadd.f32 %v1651, 1.0
      %v1718 = vadd.f32 %v1653, 1.0
      %v1719 = vadd.f32 %v1655, 1.0
      %v1720 = vrcp.pop %v1656
      %v1721 = vmul.f32 %v1656, %v1720
      %v1722 = vsub.f32 1.0, %v1721
      %v1723 = vmul.f32 %v1720, %v1722
      %v1724 = vadd.f32 %v1720, %v1723
      %vm1725 = vweird.f32 %v1656
      %vm1726 = vweird.f32 %v1720
      %vm1727 = vmor %vm1725, %vm1726
      %v1728 = vsel %vm1727, %v1720, %v1724
      %v1729 = vand.u32 2147483647, %v1656
      %vm1730 = vcmp.eq.f32.partialorder %v1729, 8.507059e+37
      %v1731 = vand.u32 %v1656, 2147483648
      %v1732 = vor.u32 1.1754944e-38, %v1731
      %v1733 = vsel %vm1730, %v1732, %v1728
      %v1734 = vmul.f32 1.0, %v1733
      %v1735 = vrcp.pop %v1657
      %v1736 = vmul.f32 %v1657, %v1735
      %v1737 = vsub.f32 1.0, %v1736
      %v1738 = vmul.f32 %v1735, %v1737
      %v1739 = vadd.f32 %v1735, %v1738
      %vm1740 = vweird.f32 %v1657
      %vm1741 = vweird.f32 %v1735
      %vm1742 = vmor %vm1740, %vm1741
      %v1743 = vsel %vm1742, %v1735, %v1739
      %v1744 = vand.u32 2147483647, %v1657
      %vm1745 = vcmp.eq.f32.partialorder %v1744, 8.507059e+37
      %v1746 = vand.u32 %v1657, 2147483648
      %v1747 = vor.u32 1.1754944e-38, %v1746
      %v1748 = vsel %vm1745, %v1747, %v1743
      %v1749 = vmul.f32 1.0, %v1748
      %v1750 = vrcp.pop %v1658
      %v1751 = vmul.f32 %v1658, %v1750
      %v1752 = vsub.f32 1.0, %v1751
      %v1753 = vmul.f32 %v1750, %v1752
      %v1754 = vadd.f32 %v1750, %v1753
      %vm1755 = vweird.f32 %v1658
      %vm1756 = vweird.f32 %v1750
      %vm1757 = vmor %vm1755, %vm1756
      %v1758 = vsel %vm1757, %v1750, %v1754
      %v1759 = vand.u32 2147483647, %v1658
      %vm1760 = vcmp.eq.f32.partialorder %v1759, 8.507059e+37
      %v1761 = vand.u32 %v1658, 2147483648
      %v1762 = vor.u32 1.1754944e-38, %v1761
      %v1763 = vsel %vm1760, %v1762, %v1758
      %v1764 = vmul.f32 1.0, %v1763
      %v1765 = vrcp.pop %v1659
      %v1766 = vmul.f32 %v1659, %v1765
      %v1767 = vsub.f32 1.0, %v1766
      %v1768 = vmul.f32 %v1765, %v1767
      %v1769 = vadd.f32 %v1765, %v1768
      %vm1770 = vweird.f32 %v1659
      %vm1771 = vweird.f32 %v1765
      %vm1772 = vmor %vm1770, %vm1771
      %v1773 = vsel %vm1772, %v1765, %v1769
      %v1774 = vand.u32 2147483647, %v1659
      %vm1775 = vcmp.eq.f32.partialorder %v1774, 8.507059e+37
      %v1776 = vand.u32 %v1659, 2147483648
      %v1777 = vor.u32 1.1754944e-38, %v1776
      %v1778 = vsel %vm1775, %v1777, %v1773
      %v1779 = vmul.f32 1.0, %v1778
      %v1780 = vrcp.pop %v1660
      %v1781 = vmul.f32 %v1660, %v1780
      %v1782 = vsub.f32 1.0, %v1781
      %v1783 = vmul.f32 %v1780, %v1782
      %v1784 = vadd.f32 %v1780, %v1783
      %vm1785 = vweird.f32 %v1660
      %vm1786 = vweird.f32 %v1780
      %vm1787 = vmor %vm1785, %vm1786
      %v1788 = vsel %vm1787, %v1780, %v1784
      %v1789 = vand.u32 2147483647, %v1660
      %vm1790 = vcmp.eq.f32.partialorder %v1789, 8.507059e+37
      %v1791 = vand.u32 %v1660, 2147483648
      %v1792 = vor.u32 1.1754944e-38, %v1791
      %v1793 = vsel %vm1790, %v1792, %v1788
      %v1794 = vmul.f32 1.0, %v1793
      %v1795 = vrcp.pop %v1661
      %v1796 = vmul.f32 %v1661, %v1795
      %v1797 = vsub.f32 1.0, %v1796
      %v1798 = vmul.f32 %v1795, %v1797
      %v1799 = vadd.f32 %v1795, %v1798
      %vm1800 = vweird.f32 %v1661
      %vm1801 = vweird.f32 %v1795
      %vm1802 = vmor %vm1800, %vm1801
      %v1803 = vsel %vm1802, %v1795, %v1799
      %v1804 = vand.u32 2147483647, %v1661
      %vm1805 = vcmp.eq.f32.partialorder %v1804, 8.507059e+37
      %v1806 = vand.u32 %v1661, 2147483648
      %v1807 = vor.u32 1.1754944e-38, %v1806
      %v1808 = vsel %vm1805, %v1807, %v1803
      %v1809 = vmul.f32 1.0, %v1808
      %v1810 = vrcp.pop %v1662
      %v1811 = vmul.f32 %v1662, %v1810
      %v1812 = vsub.f32 1.0, %v1811
      %v1813 = vmul.f32 %v1810, %v1812
      %v1814 = vadd.f32 %v1810, %v1813
      %vm1815 = vweird.f32 %v1662
      %vm1816 = vweird.f32 %v1810
      %vm1817 = vmor %vm1815, %vm1816
      %v1818 = vsel %vm1817, %v1810, %v1814
      %v1819 = vand.u32 2147483647, %v1662
      %vm1820 = vcmp.eq.f32.partialorder %v1819, 8.507059e+37
      %v1821 = vand.u32 %v1662, 2147483648
      %v1822 = vor.u32 1.1754944e-38, %v1821
      %v1823 = vsel %vm1820, %v1822, %v1818
      %v1824 = vmul.f32 1.0, %v1823
      %v1825 = vrcp.pop %v1663
      %v1826 = vmul.f32 %v1663, %v1825
      %v1827 = vsub.f32 1.0, %v1826
      %v1828 = vmul.f32 %v1825, %v1827
      %v1829 = vadd.f32 %v1825, %v1828
      %vm1830 = vweird.f32 %v1663
      %vm1831 = vweird.f32 %v1825
      %vm1832 = vmor %vm1830, %vm1831
      %v1833 = vsel %vm1832, %v1825, %v1829
      %v1834 = vand.u32 2147483647, %v1663
      %vm1835 = vcmp.eq.f32.partialorder %v1834, 8.507059e+37
      %v1836 = vand.u32 %v1663, 2147483648
      %v1837 = vor.u32 1.1754944e-38, %v1836
      %v1838 = vsel %vm1835, %v1837, %v1833
      %v1839 = vmul.f32 1.0, %v1838
      %v1840 = vrcp.pop %v1664
      %v1841 = vmul.f32 %v1664, %v1840
      %v1842 = vsub.f32 1.0, %v1841
      %v1843 = vmul.f32 %v1840, %v1842
      %v1844 = vadd.f32 %v1840, %v1843
      %vm1845 = vweird.f32 %v1664
      %vm1846 = vweird.f32 %v1840
      %vm1847 = vmor %vm1845, %vm1846
      %v1848 = vsel %vm1847, %v1840, %v1844
      %v1849 = vand.u32 2147483647, %v1664
      %vm1850 = vcmp.eq.f32.partialorder %v1849, 8.507059e+37
      %v1851 = vand.u32 %v1664, 2147483648
      %v1852 = vor.u32 1.1754944e-38, %v1851
      %v1853 = vsel %vm1850, %v1852, %v1848
      %v1854 = vmul.f32 1.0, %v1853
      %v1855 = vrcp.pop %v1665
      %v1856 = vmul.f32 %v1665, %v1855
      %v1857 = vsub.f32 1.0, %v1856
      %v1858 = vmul.f32 %v1855, %v1857
      %v1859 = vadd.f32 %v1855, %v1858
      %vm1860 = vweird.f32 %v1665
      %vm1861 = vweird.f32 %v1855
      %vm1862 = vmor %vm1860, %vm1861
      %v1863 = vsel %vm1862, %v1855, %v1859
      %v1864 = vand.u32 2147483647, %v1665
      %vm1865 = vcmp.eq.f32.partialorder %v1864, 8.507059e+37
      %v1866 = vand.u32 %v1665, 2147483648
      %v1867 = vor.u32 1.1754944e-38, %v1866
      %v1868 = vsel %vm1865, %v1867, %v1863
      %v1869 = vmul.f32 1.0, %v1868
      %v1870 = vrcp.pop %v1666
      %v1871 = vmul.f32 %v1666, %v1870
      %v1872 = vsub.f32 1.0, %v1871
      %v1873 = vmul.f32 %v1870, %v1872
      %v1874 = vadd.f32 %v1870, %v1873
      %vm1875 = vweird.f32 %v1666
      %vm1876 = vweird.f32 %v1870
      %vm1877 = vmor %vm1875, %vm1876
      %v1878 = vsel %vm1877, %v1870, %v1874
      %v1879 = vand.u32 2147483647, %v1666
      %vm1880 = vcmp.eq.f32.partialorder %v1879, 8.507059e+37
      %v1881 = vand.u32 %v1666, 2147483648
      %v1882 = vor.u32 1.1754944e-38, %v1881
      %v1883 = vsel %vm1880, %v1882, %v1878
      %v1884 = vmul.f32 1.0, %v1883
      %v1885 = vrcp.pop %v1667
      %v1886 = vmul.f32 %v1667, %v1885
      %v1887 = vsub.f32 1.0, %v1886
      %v1888 = vmul.f32 %v1885, %v1887
      %v1889 = vadd.f32 %v1885, %v1888
      %vm1890 = vweird.f32 %v1667
      %vm1891 = vweird.f32 %v1885
      %vm1892 = vmor %vm1890, %vm1891
      %v1893 = vsel %vm1892, %v1885, %v1889
      %v1894 = vand.u32 2147483647, %v1667
      %vm1895 = vcmp.eq.f32.partialorder %v1894, 8.507059e+37
      %v1896 = vand.u32 %v1667, 2147483648
      %v1897 = vor.u32 1.1754944e-38, %v1896
      %v1898 = vsel %vm1895, %v1897, %v1893
      %v1899 = vmul.f32 1.0, %v1898
      %v1900 = vrcp.pop %v1668
      %v1901 = vmul.f32 %v1668, %v1900
      %v1902 = vsub.f32 1.0, %v1901
      %v1903 = vmul.f32 %v1900, %v1902
      %v1904 = vadd.f32 %v1900, %v1903
      %vm1905 = vweird.f32 %v1668
      %vm1906 = vweird.f32 %v1900
      %vm1907 = vmor %vm1905, %vm1906
      %v1908 = vsel %vm1907, %v1900, %v1904
      %v1909 = vand.u32 2147483647, %v1668
      %vm1910 = vcmp.eq.f32.partialorder %v1909, 8.507059e+37
      %v1911 = vand.u32 %v1668, 2147483648
      %v1912 = vor.u32 1.1754944e-38, %v1911
      %v1913 = vsel %vm1910, %v1912, %v1908
      %v1914 = vmul.f32 1.0, %v1913
      %v1915 = vrcp.pop %v1669
      %v1916 = vmul.f32 %v1669, %v1915
      %v1917 = vsub.f32 1.0, %v1916
      %v1918 = vmul.f32 %v1915, %v1917
      %v1919 = vadd.f32 %v1915, %v1918
      %vm1920 = vweird.f32 %v1669
      %vm1921 = vweird.f32 %v1915
      %vm1922 = vmor %vm1920, %vm1921
      %v1923 = vsel %vm1922, %v1915, %v1919
      %v1924 = vand.u32 2147483647, %v1669
      %vm1925 = vcmp.eq.f32.partialorder %v1924, 8.507059e+37
      %v1926 = vand.u32 %v1669, 2147483648
      %v1927 = vor.u32 1.1754944e-38, %v1926
      %v1928 = vsel %vm1925, %v1927, %v1923
      %v1929 = vmul.f32 1.0, %v1928
      %v1930 = vrcp.pop %v1670
      %v1931 = vmul.f32 %v1670, %v1930
      %v1932 = vsub.f32 1.0, %v1931
      %v1933 = vmul.f32 %v1930, %v1932
      %v1934 = vadd.f32 %v1930, %v1933
      %vm1935 = vweird.f32 %v1670
      %vm1936 = vweird.f32 %v1930
      %vm1937 = vmor %vm1935, %vm1936
      %v1938 = vsel %vm1937, %v1930, %v1934
      %v1939 = vand.u32 2147483647, %v1670
      %vm1940 = vcmp.eq.f32.partialorder %v1939, 8.507059e+37
      %v1941 = vand.u32 %v1670, 2147483648
      %v1942 = vor.u32 1.1754944e-38, %v1941
      %v1943 = vsel %vm1940, %v1942, %v1938
      %v1944 = vmul.f32 1.0, %v1943
      %v1945 = vrcp.pop %v1671
      %v1946 = vmul.f32 %v1671, %v1945
      %v1947 = vsub.f32 1.0, %v1946
      %v1948 = vmul.f32 %v1945, %v1947
      %v1949 = vadd.f32 %v1945, %v1948
      %vm1950 = vweird.f32 %v1671
      %vm1951 = vweird.f32 %v1945
      %vm1952 = vmor %vm1950, %vm1951
      %v1953 = vsel %vm1952, %v1945, %v1949
      %v1954 = vand.u32 2147483647, %v1671
      %vm1955 = vcmp.eq.f32.partialorder %v1954, 8.507059e+37
      %v1956 = vand.u32 %v1671, 2147483648
      %v1957 = vor.u32 1.1754944e-38, %v1956
      %v1958 = vsel %vm1955, %v1957, %v1953
      %v1959 = vmul.f32 1.0, %v1958
      %v1960 = vrcp.pop %v1672
      %v1961 = vmul.f32 %v1672, %v1960
      %v1962 = vsub.f32 1.0, %v1961
      %v1963 = vmul.f32 %v1960, %v1962
      %v1964 = vadd.f32 %v1960, %v1963
      %vm1965 = vweird.f32 %v1672
      %vm1966 = vweird.f32 %v1960
      %vm1967 = vmor %vm1965, %vm1966
      %v1968 = vsel %vm1967, %v1960, %v1964
      %v1969 = vand.u32 2147483647, %v1672
      %vm1970 = vcmp.eq.f32.partialorder %v1969, 8.507059e+37
      %v1971 = vand.u32 %v1672, 2147483648
      %v1972 = vor.u32 1.1754944e-38, %v1971
      %v1973 = vsel %vm1970, %v1972, %v1968
      %v1974 = vmul.f32 1.0, %v1973
      %v1975 = vrcp.pop %v1673
      %v1976 = vmul.f32 %v1673, %v1975
      %v1977 = vsub.f32 1.0, %v1976
      %v1978 = vmul.f32 %v1975, %v1977
      %v1979 = vadd.f32 %v1975, %v1978
      %vm1980 = vweird.f32 %v1673
      %vm1981 = vweird.f32 %v1975
      %vm1982 = vmor %vm1980, %vm1981
      %v1983 = vsel %vm1982, %v1975, %v1979
      %v1984 = vand.u32 2147483647, %v1673
      %vm1985 = vcmp.eq.f32.partialorder %v1984, 8.507059e+37
      %v1986 = vand.u32 %v1673, 2147483648
      %v1987 = vor.u32 1.1754944e-38, %v1986
      %v1988 = vsel %vm1985, %v1987, %v1983
      %v1989 = vmul.f32 1.0, %v1988
      %v1990 = vrcp.pop %v1674
      %v1991 = vmul.f32 %v1674, %v1990
      %v1992 = vsub.f32 1.0, %v1991
      %v1993 = vmul.f32 %v1990, %v1992
      %v1994 = vadd.f32 %v1990, %v1993
      %vm1995 = vweird.f32 %v1674
      %vm1996 = vweird.f32 %v1990
      %vm1997 = vmor %vm1995, %vm1996
      %v1998 = vsel %vm1997, %v1990, %v1994
      %v1999 = vand.u32 2147483647, %v1674
      %vm2000 = vcmp.eq.f32.partialorder %v1999, 8.507059e+37
      %v2001 = vand.u32 %v1674, 2147483648
      %v2002 = vor.u32 1.1754944e-38, %v2001
      %v2003 = vsel %vm2000, %v2002, %v1998
      %v2004 = vmul.f32 1.0, %v2003
      %v2005 = vrcp.pop %v1675
      %v2006 = vmul.f32 %v1675, %v2005
      %v2007 = vsub.f32 1.0, %v2006
      %v2008 = vmul.f32 %v2005, %v2007
      %v2009 = vadd.f32 %v2005, %v2008
      %vm2010 = vweird.f32 %v1675
      %vm2011 = vweird.f32 %v2005
      %vm2012 = vmor %vm2010, %vm2011
      %v2013 = vsel %vm2012, %v2005, %v2009
      %v2014 = vand.u32 2147483647, %v1675
      %vm2015 = vcmp.eq.f32.partialorder %v2014, 8.507059e+37
      %v2016 = vand.u32 %v1675, 2147483648
      %v2017 = vor.u32 1.1754944e-38, %v2016
      %v2018 = vsel %vm2015, %v2017, %v2013
      %v2019 = vmul.f32 1.0, %v2018
      %v2020 = vrcp.pop %v1676
      %v2021 = vmul.f32 %v1676, %v2020
      %v2022 = vsub.f32 1.0, %v2021
      %v2023 = vmul.f32 %v2020, %v2022
      %v2024 = vadd.f32 %v2020, %v2023
      %vm2025 = vweird.f32 %v1676
      %vm2026 = vweird.f32 %v2020
      %vm2027 = vmor %vm2025, %vm2026
      %v2028 = vsel %vm2027, %v2020, %v2024
      %v2029 = vand.u32 2147483647, %v1676
      %vm2030 = vcmp.eq.f32.partialorder %v2029, 8.507059e+37
      %v2031 = vand.u32 %v1676, 2147483648
      %v2032 = vor.u32 1.1754944e-38, %v2031
      %v2033 = vsel %vm2030, %v2032, %v2028
      %v2034 = vmul.f32 1.0, %v2033
      %v2035 = vrcp.pop %v1677
      %v2036 = vmul.f32 %v1677, %v2035
      %v2037 = vsub.f32 1.0, %v2036
      %v2038 = vmul.f32 %v2035, %v2037
      %v2039 = vadd.f32 %v2035, %v2038
      %vm2040 = vweird.f32 %v1677
      %vm2041 = vweird.f32 %v2035
      %vm2042 = vmor %vm2040, %vm2041
      %v2043 = vsel %vm2042, %v2035, %v2039
      %v2044 = vand.u32 2147483647, %v1677
      %vm2045 = vcmp.eq.f32.partialorder %v2044, 8.507059e+37
      %v2046 = vand.u32 %v1677, 2147483648
      %v2047 = vor.u32 1.1754944e-38, %v2046
      %v2048 = vsel %vm2045, %v2047, %v2043
      %v2049 = vmul.f32 1.0, %v2048
      %v2050 = vrcp.pop %v1678
      %v2051 = vmul.f32 %v1678, %v2050
      %v2052 = vsub.f32 1.0, %v2051
      %v2053 = vmul.f32 %v2050, %v2052
      %v2054 = vadd.f32 %v2050, %v2053
      %vm2055 = vweird.f32 %v1678
      %vm2056 = vweird.f32 %v2050
      %vm2057 = vmor %vm2055, %vm2056
      %v2058 = vsel %vm2057, %v2050, %v2054
      %v2059 = vand.u32 2147483647, %v1678
      %vm2060 = vcmp.eq.f32.partialorder %v2059, 8.507059e+37
      %v2061 = vand.u32 %v1678, 2147483648
      %v2062 = vor.u32 1.1754944e-38, %v2061
      %v2063 = vsel %vm2060, %v2062, %v2058
      %v2064 = vmul.f32 1.0, %v2063
      %v2065 = vrcp.pop %v1679
      %v2066 = vmul.f32 %v1679, %v2065
      %v2067 = vsub.f32 1.0, %v2066
      %v2068 = vmul.f32 %v2065, %v2067
      %v2069 = vadd.f32 %v2065, %v2068
      %vm2070 = vweird.f32 %v1679
      %vm2071 = vweird.f32 %v2065
      %vm2072 = vmor %vm2070, %vm2071
      %v2073 = vsel %vm2072, %v2065, %v2069
      %v2074 = vand.u32 2147483647, %v1679
      %vm2075 = vcmp.eq.f32.partialorder %v2074, 8.507059e+37
      %v2076 = vand.u32 %v1679, 2147483648
      %v2077 = vor.u32 1.1754944e-38, %v2076
      %v2078 = vsel %vm2075, %v2077, %v2073
      %v2079 = vmul.f32 1.0, %v2078
      %v2080 = vrcp.pop %v1680
      %v2081 = vmul.f32 %v1680, %v2080
      %v2082 = vsub.f32 1.0, %v2081
      %v2083 = vmul.f32 %v2080, %v2082
      %v2084 = vadd.f32 %v2080, %v2083
      %vm2085 = vweird.f32 %v1680
      %vm2086 = vweird.f32 %v2080
      %vm2087 = vmor %vm2085, %vm2086
      %v2088 = vsel %vm2087, %v2080, %v2084
      %v2089 = vand.u32 2147483647, %v1680
      %vm2090 = vcmp.eq.f32.partialorder %v2089, 8.507059e+37
      %v2091 = vand.u32 %v1680, 2147483648
      %v2092 = vor.u32 1.1754944e-38, %v2091
      %v2093 = vsel %vm2090, %v2092, %v2088
      %v2094 = vmul.f32 1.0, %v2093
      %v2095 = vrcp.pop %v1681
      %v2096 = vmul.f32 %v1681, %v2095
      %v2097 = vsub.f32 1.0, %v2096
      %v2098 = vmul.f32 %v2095, %v2097
      %v2099 = vadd.f32 %v2095, %v2098
      %vm2100 = vweird.f32 %v1681
      %vm2101 = vweird.f32 %v2095
      %vm2102 = vmor %vm2100, %vm2101
      %v2103 = vsel %vm2102, %v2095, %v2099
      %v2104 = vand.u32 2147483647, %v1681
      %vm2105 = vcmp.eq.f32.partialorder %v2104, 8.507059e+37
      %v2106 = vand.u32 %v1681, 2147483648
      %v2107 = vor.u32 1.1754944e-38, %v2106
      %v2108 = vsel %vm2105, %v2107, %v2103
      %v2109 = vmul.f32 1.0, %v2108
      %v2110 = vrcp.pop %v1682
      %v2111 = vmul.f32 %v1682, %v2110
      %v2112 = vsub.f32 1.0, %v2111
      %v2113 = vmul.f32 %v2110, %v2112
      %v2114 = vadd.f32 %v2110, %v2113
      %vm2115 = vweird.f32 %v1682
      %vm2116 = vweird.f32 %v2110
      %vm2117 = vmor %vm2115, %vm2116
      %v2118 = vsel %vm2117, %v2110, %v2114
      %v2119 = vand.u32 2147483647, %v1682
      %vm2120 = vcmp.eq.f32.partialorder %v2119, 8.507059e+37
      %v2121 = vand.u32 %v1682, 2147483648
      %v2122 = vor.u32 1.1754944e-38, %v2121
      %v2123 = vsel %vm2120, %v2122, %v2118
      %v2124 = vmul.f32 1.0, %v2123
      %v2125 = vrcp.pop %v1683
      %v2126 = vmul.f32 %v1683, %v2125
      %v2127 = vsub.f32 1.0, %v2126
      %v2128 = vmul.f32 %v2125, %v2127
      %v2129 = vadd.f32 %v2125, %v2128
      %vm2130 = vweird.f32 %v1683
      %vm2131 = vweird.f32 %v2125
      %vm2132 = vmor %vm2130, %vm2131
      %v2133 = vsel %vm2132, %v2125, %v2129
      %v2134 = vand.u32 2147483647, %v1683
      %vm2135 = vcmp.eq.f32.partialorder %v2134, 8.507059e+37
      %v2136 = vand.u32 %v1683, 2147483648
      %v2137 = vor.u32 1.1754944e-38, %v2136
      %v2138 = vsel %vm2135, %v2137, %v2133
      %v2139 = vmul.f32 1.0, %v2138
      %v2140 = vrcp.pop %v1684
      %v2141 = vmul.f32 %v1684, %v2140
      %v2142 = vsub.f32 1.0, %v2141
      %v2143 = vmul.f32 %v2140, %v2142
      %v2144 = vadd.f32 %v2140, %v2143
      %vm2145 = vweird.f32 %v1684
      %vm2146 = vweird.f32 %v2140
      %vm2147 = vmor %vm2145, %vm2146
      %v2148 = vsel %vm2147, %v2140, %v2144
      %v2149 = vand.u32 2147483647, %v1684
      %vm2150 = vcmp.eq.f32.partialorder %v2149, 8.507059e+37
      %v2151 = vand.u32 %v1684, 2147483648
      %v2152 = vor.u32 1.1754944e-38, %v2151
      %v2153 = vsel %vm2150, %v2152, %v2148
      %v2154 = vmul.f32 1.0, %v2153
      %v2155 = vrcp.pop %v1685
      %v2156 = vmul.f32 %v1685, %v2155
      %v2157 = vsub.f32 1.0, %v2156
      %v2158 = vmul.f32 %v2155, %v2157
      %v2159 = vadd.f32 %v2155, %v2158
      %vm2160 = vweird.f32 %v1685
      %vm2161 = vweird.f32 %v2155
      %vm2162 = vmor %vm2160, %vm2161
      %v2163 = vsel %vm2162, %v2155, %v2159
      %v2164 = vand.u32 2147483647, %v1685
      %vm2165 = vcmp.eq.f32.partialorder %v2164, 8.507059e+37
      %v2166 = vand.u32 %v1685, 2147483648
      %v2167 = vor.u32 1.1754944e-38, %v2166
      %v2168 = vsel %vm2165, %v2167, %v2163
      %v2169 = vmul.f32 1.0, %v2168
      %v2170 = vrcp.pop %v1686
      %v2171 = vmul.f32 %v1686, %v2170
      %v2172 = vsub.f32 1.0, %v2171
      %v2173 = vmul.f32 %v2170, %v2172
      %v2174 = vadd.f32 %v2170, %v2173
      %vm2175 = vweird.f32 %v1686
      %vm2176 = vweird.f32 %v2170
      %vm2177 = vmor %vm2175, %vm2176
      %v2178 = vsel %vm2177, %v2170, %v2174
      %v2179 = vand.u32 2147483647, %v1686
      %vm2180 = vcmp.eq.f32.partialorder %v2179, 8.507059e+37
      %v2181 = vand.u32 %v1686, 2147483648
      %v2182 = vor.u32 1.1754944e-38, %v2181
      %v2183 = vsel %vm2180, %v2182, %v2178
      %v2184 = vmul.f32 1.0, %v2183
      %v2185 = vrcp.pop %v1687
      %v2186 = vmul.f32 %v1687, %v2185
      %v2187 = vsub.f32 1.0, %v2186
      %v2188 = vmul.f32 %v2185, %v2187
      %v2189 = vadd.f32 %v2185, %v2188
      %vm2190 = vweird.f32 %v1687
      %vm2191 = vweird.f32 %v2185
      %vm2192 = vmor %vm2190, %vm2191
      %v2193 = vsel %vm2192, %v2185, %v2189
      %v2194 = vand.u32 2147483647, %v1687
      %vm2195 = vcmp.eq.f32.partialorder %v2194, 8.507059e+37
      %v2196 = vand.u32 %v1687, 2147483648
      %v2197 = vor.u32 1.1754944e-38, %v2196
      %v2198 = vsel %vm2195, %v2197, %v2193
      %v2199 = vmul.f32 1.0, %v2198
      %v2200 = vrcp.pop %v1688
      %v2201 = vmul.f32 %v1688, %v2200
      %v2202 = vsub.f32 1.0, %v2201
      %v2203 = vmul.f32 %v2200, %v2202
      %v2204 = vadd.f32 %v2200, %v2203
      %vm2205 = vweird.f32 %v1688
      %vm2206 = vweird.f32 %v2200
      %vm2207 = vmor %vm2205, %vm2206
      %v2208 = vsel %vm2207, %v2200, %v2204
      %v2209 = vand.u32 2147483647, %v1688
      %vm2210 = vcmp.eq.f32.partialorder %v2209, 8.507059e+37
      %v2211 = vand.u32 %v1688, 2147483648
      %v2212 = vor.u32 1.1754944e-38, %v2211
      %v2213 = vsel %vm2210, %v2212, %v2208
      %v2214 = vmul.f32 1.0, %v2213
      %v2215 = vrcp.pop %v1689
      %v2216 = vmul.f32 %v1689, %v2215
      %v2217 = vsub.f32 1.0, %v2216
      %v2218 = vmul.f32 %v2215, %v2217
      %v2219 = vadd.f32 %v2215, %v2218
      %vm2220 = vweird.f32 %v1689
      %vm2221 = vweird.f32 %v2215
      %vm2222 = vmor %vm2220, %vm2221
      %v2223 = vsel %vm2222, %v2215, %v2219
      %v2224 = vand.u32 2147483647, %v1689
      %vm2225 = vcmp.eq.f32.partialorder %v2224, 8.507059e+37
      %v2226 = vand.u32 %v1689, 2147483648
      %v2227 = vor.u32 1.1754944e-38, %v2226
      %v2228 = vsel %vm2225, %v2227, %v2223
      %v2229 = vmul.f32 1.0, %v2228
      %v2230 = vrcp.pop %v1690
      %v2231 = vmul.f32 %v1690, %v2230
      %v2232 = vsub.f32 1.0, %v2231
      %v2233 = vmul.f32 %v2230, %v2232
      %v2234 = vadd.f32 %v2230, %v2233
      %vm2235 = vweird.f32 %v1690
      %vm2236 = vweird.f32 %v2230
      %vm2237 = vmor %vm2235, %vm2236
      %v2238 = vsel %vm2237, %v2230, %v2234
      %v2239 = vand.u32 2147483647, %v1690
      %vm2240 = vcmp.eq.f32.partialorder %v2239, 8.507059e+37
      %v2241 = vand.u32 %v1690, 2147483648
      %v2242 = vor.u32 1.1754944e-38, %v2241
      %v2243 = vsel %vm2240, %v2242, %v2238
      %v2244 = vmul.f32 1.0, %v2243
      %v2245 = vrcp.pop %v1691
      %v2246 = vmul.f32 %v1691, %v2245
      %v2247 = vsub.f32 1.0, %v2246
      %v2248 = vmul.f32 %v2245, %v2247
      %v2249 = vadd.f32 %v2245, %v2248
      %vm2250 = vweird.f32 %v1691
      %vm2251 = vweird.f32 %v2245
      %vm2252 = vmor %vm2250, %vm2251
      %v2253 = vsel %vm2252, %v2245, %v2249
      %v2254 = vand.u32 2147483647, %v1691
      %vm2255 = vcmp.eq.f32.partialorder %v2254, 8.507059e+37
      %v2256 = vand.u32 %v1691, 2147483648
      %v2257 = vor.u32 1.1754944e-38, %v2256
      %v2258 = vsel %vm2255, %v2257, %v2253
      %v2259 = vmul.f32 1.0, %v2258
      %v2260 = vrcp.pop %v1692
      %v2261 = vmul.f32 %v1692, %v2260
      %v2262 = vsub.f32 1.0, %v2261
      %v2263 = vmul.f32 %v2260, %v2262
      %v2264 = vadd.f32 %v2260, %v2263
      %vm2265 = vweird.f32 %v1692
      %vm2266 = vweird.f32 %v2260
      %vm2267 = vmor %vm2265, %vm2266
      %v2268 = vsel %vm2267, %v2260, %v2264
      %v2269 = vand.u32 2147483647, %v1692
      %vm2270 = vcmp.eq.f32.partialorder %v2269, 8.507059e+37
      %v2271 = vand.u32 %v1692, 2147483648
      %v2272 = vor.u32 1.1754944e-38, %v2271
      %v2273 = vsel %vm2270, %v2272, %v2268
      %v2274 = vmul.f32 1.0, %v2273
      %v2275 = vrcp.pop %v1693
      %v2276 = vmul.f32 %v1693, %v2275
      %v2277 = vsub.f32 1.0, %v2276
      %v2278 = vmul.f32 %v2275, %v2277
      %v2279 = vadd.f32 %v2275, %v2278
      %vm2280 = vweird.f32 %v1693
      %vm2281 = vweird.f32 %v2275
      %vm2282 = vmor %vm2280, %vm2281
      %v2283 = vsel %vm2282, %v2275, %v2279
      %v2284 = vand.u32 2147483647, %v1693
      %vm2285 = vcmp.eq.f32.partialorder %v2284, 8.507059e+37
      %v2286 = vand.u32 %v1693, 2147483648
      %v2287 = vor.u32 1.1754944e-38, %v2286
      %v2288 = vsel %vm2285, %v2287, %v2283
      %v2289 = vmul.f32 1.0, %v2288
      %v2290 = vrcp.pop %v1694
      %v2291 = vmul.f32 %v1694, %v2290
      %v2292 = vsub.f32 1.0, %v2291
      %v2293 = vmul.f32 %v2290, %v2292
      %v2294 = vadd.f32 %v2290, %v2293
      %vm2295 = vweird.f32 %v1694
      %vm2296 = vweird.f32 %v2290
      %vm2297 = vmor %vm2295, %vm2296
      %v2298 = vsel %vm2297, %v2290, %v2294
      %v2299 = vand.u32 2147483647, %v1694
      %vm2300 = vcmp.eq.f32.partialorder %v2299, 8.507059e+37
      %v2301 = vand.u32 %v1694, 2147483648
      %v2302 = vor.u32 1.1754944e-38, %v2301
      %v2303 = vsel %vm2300, %v2302, %v2298
      %v2304 = vmul.f32 1.0, %v2303
      %v2305 = vrcp.pop %v1695
      %v2306 = vmul.f32 %v1695, %v2305
      %v2307 = vsub.f32 1.0, %v2306
      %v2308 = vmul.f32 %v2305, %v2307
      %v2309 = vadd.f32 %v2305, %v2308
      %vm2310 = vweird.f32 %v1695
      %vm2311 = vweird.f32 %v2305
      %vm2312 = vmor %vm2310, %vm2311
      %v2313 = vsel %vm2312, %v2305, %v2309
      %v2314 = vand.u32 2147483647, %v1695
      %vm2315 = vcmp.eq.f32.partialorder %v2314, 8.507059e+37
      %v2316 = vand.u32 %v1695, 2147483648
      %v2317 = vor.u32 1.1754944e-38, %v2316
      %v2318 = vsel %vm2315, %v2317, %v2313
      %v2319 = vmul.f32 1.0, %v2318
      %v2320 = vrcp.pop %v1696
      %v2321 = vmul.f32 %v1696, %v2320
      %v2322 = vsub.f32 1.0, %v2321
      %v2323 = vmul.f32 %v2320, %v2322
      %v2324 = vadd.f32 %v2320, %v2323
      %vm2325 = vweird.f32 %v1696
      %vm2326 = vweird.f32 %v2320
      %vm2327 = vmor %vm2325, %vm2326
      %v2328 = vsel %vm2327, %v2320, %v2324
      %v2329 = vand.u32 2147483647, %v1696
      %vm2330 = vcmp.eq.f32.partialorder %v2329, 8.507059e+37
      %v2331 = vand.u32 %v1696, 2147483648
      %v2332 = vor.u32 1.1754944e-38, %v2331
      %v2333 = vsel %vm2330, %v2332, %v2328
      %v2334 = vmul.f32 1.0, %v2333
      %v2335 = vrcp.pop %v1697
      %v2336 = vmul.f32 %v1697, %v2335
      %v2337 = vsub.f32 1.0, %v2336
      %v2338 = vmul.f32 %v2335, %v2337
      %v2339 = vadd.f32 %v2335, %v2338
      %vm2340 = vweird.f32 %v1697
      %vm2341 = vweird.f32 %v2335
      %vm2342 = vmor %vm2340, %vm2341
      %v2343 = vsel %vm2342, %v2335, %v2339
      %v2344 = vand.u32 2147483647, %v1697
      %vm2345 = vcmp.eq.f32.partialorder %v2344, 8.507059e+37
      %v2346 = vand.u32 %v1697, 2147483648
      %v2347 = vor.u32 1.1754944e-38, %v2346
      %v2348 = vsel %vm2345, %v2347, %v2343
      %v2349 = vmul.f32 1.0, %v2348
      %v2350 = vrcp.pop %v1698
      %v2351 = vmul.f32 %v1698, %v2350
      %v2352 = vsub.f32 1.0, %v2351
      %v2353 = vmul.f32 %v2350, %v2352
      %v2354 = vadd.f32 %v2350, %v2353
      %vm2355 = vweird.f32 %v1698
      %vm2356 = vweird.f32 %v2350
      %vm2357 = vmor %vm2355, %vm2356
      %v2358 = vsel %vm2357, %v2350, %v2354
      %v2359 = vand.u32 2147483647, %v1698
      %vm2360 = vcmp.eq.f32.partialorder %v2359, 8.507059e+37
      %v2361 = vand.u32 %v1698, 2147483648
      %v2362 = vor.u32 1.1754944e-38, %v2361
      %v2363 = vsel %vm2360, %v2362, %v2358
      %v2364 = vmul.f32 1.0, %v2363
      %v2365 = vrcp.pop %v1699
      %v2366 = vmul.f32 %v1699, %v2365
      %v2367 = vsub.f32 1.0, %v2366
      %v2368 = vmul.f32 %v2365, %v2367
      %v2369 = vadd.f32 %v2365, %v2368
      %vm2370 = vweird.f32 %v1699
      %vm2371 = vweird.f32 %v2365
      %vm2372 = vmor %vm2370, %vm2371
      %v2373 = vsel %vm2372, %v2365, %v2369
      %v2374 = vand.u32 2147483647, %v1699
      %vm2375 = vcmp.eq.f32.partialorder %v2374, 8.507059e+37
      %v2376 = vand.u32 %v1699, 2147483648
      %v2377 = vor.u32 1.1754944e-38, %v2376
      %v2378 = vsel %vm2375, %v2377, %v2373
      %v2379 = vmul.f32 1.0, %v2378
      %v2380 = vrcp.pop %v1700
      %v2381 = vmul.f32 %v1700, %v2380
      %v2382 = vsub.f32 1.0, %v2381
      %v2383 = vmul.f32 %v2380, %v2382
      %v2384 = vadd.f32 %v2380, %v2383
      %vm2385 = vweird.f32 %v1700
      %vm2386 = vweird.f32 %v2380
      %vm2387 = vmor %vm2385, %vm2386
      %v2388 = vsel %vm2387, %v2380, %v2384
      %v2389 = vand.u32 2147483647, %v1700
      %vm2390 = vcmp.eq.f32.partialorder %v2389, 8.507059e+37
      %v2391 = vand.u32 %v1700, 2147483648
      %v2392 = vor.u32 1.1754944e-38, %v2391
      %v2393 = vsel %vm2390, %v2392, %v2388
      %v2394 = vmul.f32 1.0, %v2393
      %v2395 = vrcp.pop %v1701
      %v2396 = vmul.f32 %v1701, %v2395
      %v2397 = vsub.f32 1.0, %v2396
      %v2398 = vmul.f32 %v2395, %v2397
      %v2399 = vadd.f32 %v2395, %v2398
      %vm2400 = vweird.f32 %v1701
      %vm2401 = vweird.f32 %v2395
      %vm2402 = vmor %vm2400, %vm2401
      %v2403 = vsel %vm2402, %v2395, %v2399
      %v2404 = vand.u32 2147483647, %v1701
      %vm2405 = vcmp.eq.f32.partialorder %v2404, 8.507059e+37
      %v2406 = vand.u32 %v1701, 2147483648
      %v2407 = vor.u32 1.1754944e-38, %v2406
      %v2408 = vsel %vm2405, %v2407, %v2403
      %v2409 = vmul.f32 1.0, %v2408
      %v2410 = vrcp.pop %v1702
      %v2411 = vmul.f32 %v1702, %v2410
      %v2412 = vsub.f32 1.0, %v2411
      %v2413 = vmul.f32 %v2410, %v2412
      %v2414 = vadd.f32 %v2410, %v2413
      %vm2415 = vweird.f32 %v1702
      %vm2416 = vweird.f32 %v2410
      %vm2417 = vmor %vm2415, %vm2416
      %v2418 = vsel %vm2417, %v2410, %v2414
      %v2419 = vand.u32 2147483647, %v1702
      %vm2420 = vcmp.eq.f32.partialorder %v2419, 8.507059e+37
      %v2421 = vand.u32 %v1702, 2147483648
      %v2422 = vor.u32 1.1754944e-38, %v2421
      %v2423 = vsel %vm2420, %v2422, %v2418
      %v2424 = vmul.f32 1.0, %v2423
      %v2425 = vrcp.pop %v1703
      %v2426 = vmul.f32 %v1703, %v2425
      %v2427 = vsub.f32 1.0, %v2426
      %v2428 = vmul.f32 %v2425, %v2427
      %v2429 = vadd.f32 %v2425, %v2428
      %vm2430 = vweird.f32 %v1703
      %vm2431 = vweird.f32 %v2425
      %vm2432 = vmor %vm2430, %vm2431
      %v2433 = vsel %vm2432, %v2425, %v2429
      %v2434 = vand.u32 2147483647, %v1703
      %vm2435 = vcmp.eq.f32.partialorder %v2434, 8.507059e+37
      %v2436 = vand.u32 %v1703, 2147483648
      %v2437 = vor.u32 1.1754944e-38, %v2436
      %v2438 = vsel %vm2435, %v2437, %v2433
      %v2439 = vmul.f32 1.0, %v2438
      %v2440 = vrcp.pop %v1704
      %v2441 = vmul.f32 %v1704, %v2440
      %v2442 = vsub.f32 1.0, %v2441
      %v2443 = vmul.f32 %v2440, %v2442
      %v2444 = vadd.f32 %v2440, %v2443
      %vm2445 = vweird.f32 %v1704
      %vm2446 = vweird.f32 %v2440
      %vm2447 = vmor %vm2445, %vm2446
      %v2448 = vsel %vm2447, %v2440, %v2444
      %v2449 = vand.u32 2147483647, %v1704
      %vm2450 = vcmp.eq.f32.partialorder %v2449, 8.507059e+37
      %v2451 = vand.u32 %v1704, 2147483648
      %v2452 = vor.u32 1.1754944e-38, %v2451
      %v2453 = vsel %vm2450, %v2452, %v2448
      %v2454 = vmul.f32 1.0, %v2453
      %v2455 = vrcp.pop %v1705
      %v2456 = vmul.f32 %v1705, %v2455
      %v2457 = vsub.f32 1.0, %v2456
      %v2458 = vmul.f32 %v2455, %v2457
      %v2459 = vadd.f32 %v2455, %v2458
      %vm2460 = vweird.f32 %v1705
      %vm2461 = vweird.f32 %v2455
      %vm2462 = vmor %vm2460, %vm2461
      %v2463 = vsel %vm2462, %v2455, %v2459
      %v2464 = vand.u32 2147483647, %v1705
      %vm2465 = vcmp.eq.f32.partialorder %v2464, 8.507059e+37
      %v2466 = vand.u32 %v1705, 2147483648
      %v2467 = vor.u32 1.1754944e-38, %v2466
      %v2468 = vsel %vm2465, %v2467, %v2463
      %v2469 = vmul.f32 1.0, %v2468
      %v2470 = vrcp.pop %v1706
      %v2471 = vmul.f32 %v1706, %v2470
      %v2472 = vsub.f32 1.0, %v2471
      %v2473 = vmul.f32 %v2470, %v2472
      %v2474 = vadd.f32 %v2470, %v2473
      %vm2475 = vweird.f32 %v1706
      %vm2476 = vweird.f32 %v2470
      %vm2477 = vmor %vm2475, %vm2476
      %v2478 = vsel %vm2477, %v2470, %v2474
      %v2479 = vand.u32 2147483647, %v1706
      %vm2480 = vcmp.eq.f32.partialorder %v2479, 8.507059e+37
      %v2481 = vand.u32 %v1706, 2147483648
      %v2482 = vor.u32 1.1754944e-38, %v2481
      %v2483 = vsel %vm2480, %v2482, %v2478
      %v2484 = vmul.f32 1.0, %v2483
      %v2485 = vrcp.pop %v1707
      %v2486 = vmul.f32 %v1707, %v2485
      %v2487 = vsub.f32 1.0, %v2486
      %v2488 = vmul.f32 %v2485, %v2487
      %v2489 = vadd.f32 %v2485, %v2488
      %vm2490 = vweird.f32 %v1707
      %vm2491 = vweird.f32 %v2485
      %vm2492 = vmor %vm2490, %vm2491
      %v2493 = vsel %vm2492, %v2485, %v2489
      %v2494 = vand.u32 2147483647, %v1707
      %vm2495 = vcmp.eq.f32.partialorder %v2494, 8.507059e+37
      %v2496 = vand.u32 %v1707, 2147483648
      %v2497 = vor.u32 1.1754944e-38, %v2496
      %v2498 = vsel %vm2495, %v2497, %v2493
      %v2499 = vmul.f32 1.0, %v2498
      %v2500 = vrcp.pop %v1708
      %v2501 = vmul.f32 %v1708, %v2500
      %v2502 = vsub.f32 1.0, %v2501
      %v2503 = vmul.f32 %v2500, %v2502
      %v2504 = vadd.f32 %v2500, %v2503
      %vm2505 = vweird.f32 %v1708
      %vm2506 = vweird.f32 %v2500
      %vm2507 = vmor %vm2505, %vm2506
      %v2508 = vsel %vm2507, %v2500, %v2504
      %v2509 = vand.u32 2147483647, %v1708
      %vm2510 = vcmp.eq.f32.partialorder %v2509, 8.507059e+37
      %v2511 = vand.u32 %v1708, 2147483648
      %v2512 = vor.u32 1.1754944e-38, %v2511
      %v2513 = vsel %vm2510, %v2512, %v2508
      %v2514 = vmul.f32 1.0, %v2513
      %v2515 = vrcp.pop %v1709
      %v2516 = vmul.f32 %v1709, %v2515
      %v2517 = vsub.f32 1.0, %v2516
      %v2518 = vmul.f32 %v2515, %v2517
      %v2519 = vadd.f32 %v2515, %v2518
      %vm2520 = vweird.f32 %v1709
      %vm2521 = vweird.f32 %v2515
      %vm2522 = vmor %vm2520, %vm2521
      %v2523 = vsel %vm2522, %v2515, %v2519
      %v2524 = vand.u32 2147483647, %v1709
      %vm2525 = vcmp.eq.f32.partialorder %v2524, 8.507059e+37
      %v2526 = vand.u32 %v1709, 2147483648
      %v2527 = vor.u32 1.1754944e-38, %v2526
      %v2528 = vsel %vm2525, %v2527, %v2523
      %v2529 = vmul.f32 1.0, %v2528
      %v2530 = vrcp.pop %v1710
      %v2531 = vmul.f32 %v1710, %v2530
      %v2532 = vsub.f32 1.0, %v2531
      %v2533 = vmul.f32 %v2530, %v2532
      %v2534 = vadd.f32 %v2530, %v2533
      %vm2535 = vweird.f32 %v1710
      %vm2536 = vweird.f32 %v2530
      %vm2537 = vmor %vm2535, %vm2536
      %v2538 = vsel %vm2537, %v2530, %v2534
      %v2539 = vand.u32 2147483647, %v1710
      %vm2540 = vcmp.eq.f32.partialorder %v2539, 8.507059e+37
      %v2541 = vand.u32 %v1710, 2147483648
      %v2542 = vor.u32 1.1754944e-38, %v2541
      %v2543 = vsel %vm2540, %v2542, %v2538
      %v2544 = vmul.f32 1.0, %v2543
      %v2545 = vrcp.pop %v1711
      %v2546 = vmul.f32 %v1711, %v2545
      %v2547 = vsub.f32 1.0, %v2546
      %v2548 = vmul.f32 %v2545, %v2547
      %v2549 = vadd.f32 %v2545, %v2548
      %vm2550 = vweird.f32 %v1711
      %vm2551 = vweird.f32 %v2545
      %vm2552 = vmor %vm2550, %vm2551
      %v2553 = vsel %vm2552, %v2545, %v2549
      %v2554 = vand.u32 2147483647, %v1711
      %vm2555 = vcmp.eq.f32.partialorder %v2554, 8.507059e+37
      %v2556 = vand.u32 %v1711, 2147483648
      %v2557 = vor.u32 1.1754944e-38, %v2556
      %v2558 = vsel %vm2555, %v2557, %v2553
      %v2559 = vmul.f32 1.0, %v2558
      %v2560 = vrcp.pop %v1712
      %v2561 = vmul.f32 %v1712, %v2560
      %v2562 = vsub.f32 1.0, %v2561
      %v2563 = vmul.f32 %v2560, %v2562
      %v2564 = vadd.f32 %v2560, %v2563
      %vm2565 = vweird.f32 %v1712
      %vm2566 = vweird.f32 %v2560
      %vm2567 = vmor %vm2565, %vm2566
      %v2568 = vsel %vm2567, %v2560, %v2564
      %v2569 = vand.u32 2147483647, %v1712
      %vm2570 = vcmp.eq.f32.partialorder %v2569, 8.507059e+37
      %v2571 = vand.u32 %v1712, 2147483648
      %v2572 = vor.u32 1.1754944e-38, %v2571
      %v2573 = vsel %vm2570, %v2572, %v2568
      %v2574 = vmul.f32 1.0, %v2573
      %v2575 = vrcp.pop %v1713
      %v2576 = vmul.f32 %v1713, %v2575
      %v2577 = vsub.f32 1.0, %v2576
      %v2578 = vmul.f32 %v2575, %v2577
      %v2579 = vadd.f32 %v2575, %v2578
      %vm2580 = vweird.f32 %v1713
      %vm2581 = vweird.f32 %v2575
      %vm2582 = vmor %vm2580, %vm2581
      %v2583 = vsel %vm2582, %v2575, %v2579
      %v2584 = vand.u32 2147483647, %v1713
      %vm2585 = vcmp.eq.f32.partialorder %v2584, 8.507059e+37
      %v2586 = vand.u32 %v1713, 2147483648
      %v2587 = vor.u32 1.1754944e-38, %v2586
      %v2588 = vsel %vm2585, %v2587, %v2583
      %v2589 = vmul.f32 1.0, %v2588
      %v2590 = vrcp.pop %v1714
      %v2591 = vmul.f32 %v1714, %v2590
      %v2592 = vsub.f32 1.0, %v2591
      %v2593 = vmul.f32 %v2590, %v2592
      %v2594 = vadd.f32 %v2590, %v2593
      %vm2595 = vweird.f32 %v1714
      %vm2596 = vweird.f32 %v2590
      %vm2597 = vmor %vm2595, %vm2596
      %v2598 = vsel %vm2597, %v2590, %v2594
      %v2599 = vand.u32 2147483647, %v1714
      %vm2600 = vcmp.eq.f32.partialorder %v2599, 8.507059e+37
      %v2601 = vand.u32 %v1714, 2147483648
      %v2602 = vor.u32 1.1754944e-38, %v2601
      %v2603 = vsel %vm2600, %v2602, %v2598
      %v2604 = vmul.f32 1.0, %v2603
      %v2605 = vrcp.pop %v1715
      %v2606 = vmul.f32 %v1715, %v2605
      %v2607 = vsub.f32 1.0, %v2606
      %v2608 = vmul.f32 %v2605, %v2607
      %v2609 = vadd.f32 %v2605, %v2608
      %vm2610 = vweird.f32 %v1715
      %vm2611 = vweird.f32 %v2605
      %vm2612 = vmor %vm2610, %vm2611
      %v2613 = vsel %vm2612, %v2605, %v2609
      %v2614 = vand.u32 2147483647, %v1715
      %vm2615 = vcmp.eq.f32.partialorder %v2614, 8.507059e+37
      %v2616 = vand.u32 %v1715, 2147483648
      %v2617 = vor.u32 1.1754944e-38, %v2616
      %v2618 = vsel %vm2615, %v2617, %v2613
      %v2619 = vmul.f32 1.0, %v2618
      %v2620 = vrcp.pop %v1716
      %v2621 = vmul.f32 %v1716, %v2620
      %v2622 = vsub.f32 1.0, %v2621
      %v2623 = vmul.f32 %v2620, %v2622
      %v2624 = vadd.f32 %v2620, %v2623
      %vm2625 = vweird.f32 %v1716
      %vm2626 = vweird.f32 %v2620
      %vm2627 = vmor %vm2625, %vm2626
      %v2628 = vsel %vm2627, %v2620, %v2624
      %v2629 = vand.u32 2147483647, %v1716
      %vm2630 = vcmp.eq.f32.partialorder %v2629, 8.507059e+37
      %v2631 = vand.u32 %v1716, 2147483648
      %v2632 = vor.u32 1.1754944e-38, %v2631
      %v2633 = vsel %vm2630, %v2632, %v2628
      %v2634 = vmul.f32 1.0, %v2633
      %v2635 = vrcp.pop %v1717
      %v2636 = vmul.f32 %v1717, %v2635
      %v2637 = vsub.f32 1.0, %v2636
      %v2638 = vmul.f32 %v2635, %v2637
      %v2639 = vadd.f32 %v2635, %v2638
      %vm2640 = vweird.f32 %v1717
      %vm2641 = vweird.f32 %v2635
      %vm2642 = vmor %vm2640, %vm2641
      %v2643 = vsel %vm2642, %v2635, %v2639
      %v2644 = vand.u32 2147483647, %v1717
      %vm2645 = vcmp.eq.f32.partialorder %v2644, 8.507059e+37
      %v2646 = vand.u32 %v1717, 2147483648
      %v2647 = vor.u32 1.1754944e-38, %v2646
      %v2648 = vsel %vm2645, %v2647, %v2643
      %v2649 = vmul.f32 1.0, %v2648
      %v2650 = vrcp.pop %v1718
      %v2651 = vmul.f32 %v1718, %v2650
      %v2652 = vsub.f32 1.0, %v2651
      %v2653 = vmul.f32 %v2650, %v2652
      %v2654 = vadd.f32 %v2650, %v2653
      %vm2655 = vweird.f32 %v1718
      %vm2656 = vweird.f32 %v2650
      %vm2657 = vmor %vm2655, %vm2656
      %v2658 = vsel %vm2657, %v2650, %v2654
      %v2659 = vand.u32 2147483647, %v1718
      %vm2660 = vcmp.eq.f32.partialorder %v2659, 8.507059e+37
      %v2661 = vand.u32 %v1718, 2147483648
      %v2662 = vor.u32 1.1754944e-38, %v2661
      %v2663 = vsel %vm2660, %v2662, %v2658
      %v2664 = vmul.f32 1.0, %v2663
      %v2665 = vrcp.pop %v1719
      %v2666 = vmul.f32 %v1719, %v2665
      %v2667 = vsub.f32 1.0, %v2666
      %v2668 = vmul.f32 %v2665, %v2667
      %v2669 = vadd.f32 %v2665, %v2668
      %vm2670 = vweird.f32 %v1719
      %vm2671 = vweird.f32 %v2665
      %vm2672 = vmor %vm2670, %vm2671
      %v2673 = vsel %vm2672, %v2665, %v2669
      %v2674 = vand.u32 2147483647, %v1719
      %vm2675 = vcmp.eq.f32.partialorder %v2674, 8.507059e+37
      %v2676 = vand.u32 %v1719, 2147483648
      %v2677 = vor.u32 1.1754944e-38, %v2676
      %v2678 = vsel %vm2675, %v2677, %v2673
      %v2679 = vmul.f32 1.0, %v2678
      %vm2680 = vcmask 7168
      %2681 = vst.msk [vmem:[%s282] sm:$0xff] %vm2680, %v1734
      %2682 = vst.msk [vmem:[%s282 + $0x8] sm:$0xff] %vm2680, %v1749
      %2683 = vst.msk [vmem:[%s282 + $0x10] sm:$0xff] %vm2680, %v1764
      %2684 = vst.msk [vmem:[%s282 + $0x18] sm:$0xff] %vm2680, %v1779
      %2685 = vst.msk [vmem:[%s282 + $0x20] sm:$0xff] %vm2680, %v1794
      %2686 = vst.msk [vmem:[%s282 + $0x28] sm:$0xff] %vm2680, %v1809
      %2687 = vst.msk [vmem:[%s282 + $0x30] sm:$0xff] %vm2680, %v1824
      %2688 = vst.msk [vmem:[%s282 + $0x38] sm:$0xff] %vm2680, %v1839
      %2689 = vst.msk [vmem:[%s282 + $0x40] sm:$0xff] %vm2680, %v1854
      %2690 = vst.msk [vmem:[%s282 + $0x48] sm:$0xff] %vm2680, %v1869
      %2691 = vst.msk [vmem:[%s282 + $0x50] sm:$0xff] %vm2680, %v1884
      %2692 = vst.msk [vmem:[%s282 + $0x58] sm:$0xff] %vm2680, %v1899
      %2693 = vst.msk [vmem:[%s282 + $0x60] sm:$0xff] %vm2680, %v1914
      %2694 = vst.msk [vmem:[%s282 + $0x68] sm:$0xff] %vm2680, %v1929
      %2695 = vst.msk [vmem:[%s282 + $0x70] sm:$0xff] %vm2680, %v1944
      %2696 = vst.msk [vmem:[%s282 + $0x78] sm:$0xff] %vm2680, %v1959
      %2697 = vst.msk [vmem:[%s282 + $0x80] sm:$0xff] %vm2680, %v1974
      %2698 = vst.msk [vmem:[%s282 + $0x88] sm:$0xff] %vm2680, %v1989
      %2699 = vst.msk [vmem:[%s282 + $0x90] sm:$0xff] %vm2680, %v2004
      %2700 = vst.msk [vmem:[%s282 + $0x98] sm:$0xff] %vm2680, %v2019
      %2701 = vst.msk [vmem:[%s282 + $0xa0] sm:$0xff] %vm2680, %v2034
      %2702 = vst.msk [vmem:[%s282 + $0xa8] sm:$0xff] %vm2680, %v2049
      %2703 = vst.msk [vmem:[%s282 + $0xb0] sm:$0xff] %vm2680, %v2064
      %2704 = vst.msk [vmem:[%s282 + $0xb8] sm:$0xff] %vm2680, %v2079
      %2705 = vst.msk [vmem:[%s282 + $0xc0] sm:$0xff] %vm2680, %v2094
      %2706 = vst.msk [vmem:[%s282 + $0xc8] sm:$0xff] %vm2680, %v2109
      %2707 = vst.msk [vmem:[%s282 + $0xd0] sm:$0xff] %vm2680, %v2124
      %2708 = vst.msk [vmem:[%s282 + $0xd8] sm:$0xff] %vm2680, %v2139
      %2709 = vst.msk [vmem:[%s282 + $0xe0] sm:$0xff] %vm2680, %v2154
      %2710 = vst.msk [vmem:[%s282 + $0xe8] sm:$0xff] %vm2680, %v2169
      %2711 = vst.msk [vmem:[%s282 + $0xf0] sm:$0xff] %vm2680, %v2184
      %2712 = vst.msk [vmem:[%s282 + $0xf8] sm:$0xff] %vm2680, %v2199
      %2713 = vst.msk [vmem:[%s282 + $0x100] sm:$0xff] %vm2680, %v2214
      %2714 = vst.msk [vmem:[%s282 + $0x108] sm:$0xff] %vm2680, %v2229
      %2715 = vst.msk [vmem:[%s282 + $0x110] sm:$0xff] %vm2680, %v2244
      %2716 = vst.msk [vmem:[%s282 + $0x118] sm:$0xff] %vm2680, %v2259
      %2717 = vst.msk [vmem:[%s282 + $0x120] sm:$0xff] %vm2680, %v2274
      %2718 = vst.msk [vmem:[%s282 + $0x128] sm:$0xff] %vm2680, %v2289
      %2719 = vst.msk [vmem:[%s282 + $0x130] sm:$0xff] %vm2680, %v2304
      %2720 = vst.msk [vmem:[%s282 + $0x138] sm:$0xff] %vm2680, %v2319
      %2721 = vst.msk [vmem:[%s282 + $0x140] sm:$0xff] %vm2680, %v2334
      %2722 = vst.msk [vmem:[%s282 + $0x148] sm:$0xff] %vm2680, %v2349
      %2723 = vst.msk [vmem:[%s282 + $0x150] sm:$0xff] %vm2680, %v2364
      %2724 = vst.msk [vmem:[%s282 + $0x158] sm:$0xff] %vm2680, %v2379
      %2725 = vst.msk [vmem:[%s282 + $0x160] sm:$0xff] %vm2680, %v2394
      %2726 = vst.msk [vmem:[%s282 + $0x168] sm:$0xff] %vm2680, %v2409
      %2727 = vst.msk [vmem:[%s282 + $0x170] sm:$0xff] %vm2680, %v2424
      %2728 = vst.msk [vmem:[%s282 + $0x178] sm:$0xff] %vm2680, %v2439
      %2729 = vst.msk [vmem:[%s282 + $0x180] sm:$0xff] %vm2680, %v2454
      %2730 = vst.msk [vmem:[%s282 + $0x188] sm:$0xff] %vm2680, %v2469
      %2731 = vst.msk [vmem:[%s282 + $0x190] sm:$0xff] %vm2680, %v2484
      %2732 = vst.msk [vmem:[%s282 + $0x198] sm:$0xff] %vm2680, %v2499
      %2733 = vst.msk [vmem:[%s282 + $0x1a0] sm:$0xff] %vm2680, %v2514
      %2734 = vst.msk [vmem:[%s282 + $0x1a8] sm:$0xff] %vm2680, %v2529
      %2735 = vst.msk [vmem:[%s282 + $0x1b0] sm:$0xff] %vm2680, %v2544
      %2736 = vst.msk [vmem:[%s282 + $0x1b8] sm:$0xff] %vm2680, %v2559
      %2737 = vst.msk [vmem:[%s282 + $0x1c0] sm:$0xff] %vm2680, %v2574
      %2738 = vst.msk [vmem:[%s282 + $0x1c8] sm:$0xff] %vm2680, %v2589
      %2739 = vst.msk [vmem:[%s282 + $0x1d0] sm:$0xff] %vm2680, %v2604
      %2740 = vst.msk [vmem:[%s282 + $0x1d8] sm:$0xff] %vm2680, %v2619
      %2741 = vst.msk [vmem:[%s282 + $0x1e0] sm:$0xff] %vm2680, %v2634
      %2742 = vst.msk [vmem:[%s282 + $0x1e8] sm:$0xff] %vm2680, %v2649
      %2743 = vst.msk [vmem:[%s282 + $0x1f0] sm:$0xff] %vm2680, %v2664
      %2744 = vst.msk [vmem:[%s282 + $0x1f8] sm:$0xff] %vm2680, %v2679
      %s2745 = smul.u32 64, %s20
      %p2746 = scmp.lt.s32.totalorder %s2745, 127
      %s2747 = scalar_select %p2746, %s2745, 127
      %s2748 = smul.addr %s2747, 8
      %s2749 = scalar_lea.vmem %s7, %s2748
      // Predicated region
      $region49: #{tpu_custom_call.1} parent=47 // pred_check
        %p2750 = pneg %p190
      $region50: #{tpu_custom_call.1} parent=47 // pred_check_branch
        %2752 = sbr.rel (%p2750) target = $region52
      $region51: #{tpu_custom_call.1} parent=47 // pred_region
        %s2753 = smul.u32 64, %s20
      $region52: #{tpu_custom_call.1} parent=47 // pred_fallthru
        _
    $region48: #{tpu_custom_call.1} parent=5 // pred_fallthru
      _
    %p2754 = scmp.le.s32.totalorder 2, %s15
    // Predicated region
    $region53: #{tpu_custom_call.1} parent=5 // pred_check
      %p2755 = pneg %p2754
    $region54: #{tpu_custom_call.1} parent=5 // pred_check_branch
      %2757 = sbr.rel (%p2755) target = $region56
    $region55: #{tpu_custom_call.1} parent=5 // pred_region
      %s2758 = ssub.s32 %s15, 2
      // Predicated region
      $region57: #{tpu_custom_call.1} parent=55 // pred_check
        %p2759 = pneg %p196
      $region58: #{tpu_custom_call.1} parent=55 // pred_check_branch
        %2761 = sbr.rel (%p2759) target = $region60
      $region59: #{tpu_custom_call.1} parent=55 // pred_region
        %s2762 = smul.u32 64, %s21
        %p2763 = scmp.lt.s32.totalorder %s2762, 127
        %s2764 = scalar_select %p2763, %s2762, 127
        %s2765 = smul.addr %s2764, 8
        %s2766 = scalar_lea.vmem %s7, %s2765
      $region60: #{tpu_custom_call.1} parent=55 // pred_fallthru
        _
    $region56: #{tpu_custom_call.1} parent=5 // pred_fallthru
      _
  $region6: #{tpu_custom_call.1} parent=0 // loop_footer
    %s19 = sadd.s32 1, %s15
  $region7: #{tpu_custom_call.1} parent=0 // loop_footer_branch
    %14 = sbr.rel target = $region3
  $region8: #{tpu_custom_call.1} parent=0 // loop_exit
    _

</llo_original>
